<compile_context>
chip_gen: v7x
topology: tpu7x:2x2x1
jax: 0.10.0
libtpu: 0.0.40
codegen_flags: <defaults>
</compile_context>

<pallas_src>
import math
import functools

import jax
import jax.numpy as jnp
from jax.experimental import pallas as pl
from jax.experimental.pallas import tpu as pltpu


# ----------------------------------------------------------------------------
# Config (mirrors `args` of the PyTorch module)
# ----------------------------------------------------------------------------
class Args:
    emb_dim = 32
    n_heads = 4
    rnn_hidden_dim = 32
    n_fixed_actions = 6
    n_enemies = 3
    n_agents = 5
    action_enemy_wise = True
    action_ally_wise = True


INPUT_SHAPE = 16                                   # per-token feature size
BATCH = 2
TOKENS = 1 + Args.n_enemies + (Args.n_agents - 1)  # self + enemies + allies = 8


def _round_up(x, m):
    return (x + m - 1) // m * m


def _slab_rows(d_in, emb_dim, hidden_dim):
    """Row offsets of each weight section inside the single bf16 slab.

    Every offset is a multiple of 16 (the bf16 sublane pack), so each static
    slice taken in the kernel is an aligned, copy-free view.  If `d_in`
    changes, the w_emb section is row-padded rather than letting Mosaic handle
    misaligned sub-tile views.
    """
    E, H = emb_dim, hidden_dim
    assert E % 16 == 0 and H % 16 == 0, "emb/hidden dims must be sublane-aligned"
    d_in_p = _round_up(d_in, 16)
    off = {}
    off["qkv"] = 0                       # (E, 3E)   [Q|K|V], Q pre-scaled
    off["gi"] = E                        # (H, 3H)   [r|z|n]
    off["gh"] = E + H                    # (H, 3H)   [r|z|n]
    off["emb"] = E + 2 * H               # (d_in, E) row-padded to d_in_p
    off["o"] = off["emb"] + d_in_p       # (E, E)
    off["attn"] = off["o"] + E           # (E, H)
    off["rnn"] = off["attn"] + E         # (E, H)
    off["fc1"] = off["rnn"] + E          # (H, A)    acts on x1
    off["fc2"] = off["fc1"] + H          # (H, A)    acts on h
    off["end"] = off["fc2"] + H
    for v in off.values():
        assert v % 16 == 0
    return off, d_in_p


# ----------------------------------------------------------------------------
# Pallas kernel: the full forward for the whole (batch, tokens) problem
# ----------------------------------------------------------------------------
def agent_kernel(
    # activations
    x_ref, valid_ref, h_in_ref,
    # packed weights (one bf16 slab) / biases (one f32 slab)
    w_ref, bias_ref,
    # outputs
    q_ref, h_out_ref,
    # scratch
    o_scr,
    *, batch, tokens, d_in, emb_dim, n_heads, hidden_dim,
    n_actions, n_enemies, n_agents, enemy_wise, ally_wise,
):
    f32, bf16 = jnp.float32, jnp.bfloat16
    B, T, E, H, A = batch, tokens, emb_dim, hidden_dim, n_actions
    BT = B * T
    hd = E // n_heads
    off, _ = _slab_rows(d_in, E, H)

    def mm(a_bf, w):
        # bf16 MXU operands, f32 accumulation; elementwise math stays f32.
        return jnp.dot(a_bf, w, preferred_element_type=f32)

    # ---- packed weight views (bf16, sublane-aligned static slices) ----------
    w_qkv = w_ref[off["qkv"]:off["qkv"] + E, 0:3 * E]
    w_gi = w_ref[off["gi"]:off["gi"] + H, 0:3 * H]
    w_gh = w_ref[off["gh"]:off["gh"] + H, 0:3 * H]
    w_emb = w_ref[off["emb"]:off["emb"] + d_in, 0:E]
    w_o = w_ref[off["o"]:off["o"] + E, 0:E]
    w_attn = w_ref[off["attn"]:off["attn"] + E, 0:H]
    w_rnn = w_ref[off["rnn"]:off["rnn"] + E, 0:H]
    w_fc1 = w_ref[off["fc1"]:off["fc1"] + H, 0:A]
    w_fc2 = w_ref[off["fc2"]:off["fc2"] + H, 0:A]

    # ---- packed bias views (f32) ---------------------------------------------
    b_emb = bias_ref[0:1, 0:E]
    b_qkv = bias_ref[1:2, 0:3 * E]
    b_o = bias_ref[2:3, 0:E]
    b_attn = bias_ref[3:4, 0:H]
    b_rnn = bias_ref[4:5, 0:H]
    b_gi = bias_ref[5:6, 0:3 * H]
    b_gh = bias_ref[6:7, 0:3 * H]
    b_fc = bias_ref[7:8, 0:A]

    x = x_ref[...]                       # (BT, d_in) f32
    valid = valid_ref[...] > 0.0         # (BT, BT): query i may attend key j
    h_in = h_in_ref[...]                 # (BT, H)   f32

    # ---- token embedding + relu ----------------------------------------------
    x_emb = jnp.maximum(mm(x.astype(bf16), w_emb) + b_emb, 0.0)        # (BT, E)
    x_emb_bf = x_emb.astype(bf16)                                      # hoisted cast

    # ---- fused QKV projection (Q columns pre-scaled by 1/sqrt(hd)) -----------
    qkv = mm(x_emb_bf, w_qkv) + b_qkv                                  # (BT, 3E)
    qkv_bf = qkv.astype(bf16)

    # ---- per-head attention, heads unrolled over static LANE slices ----------
    # (no (BT, nh, hd) reshapes / batched einsums -> no XLU relayouts)
    for hh in range(n_heads):
        lo = hh * hd
        qh = qkv_bf[:, lo:lo + hd]                   # (BT, hd)
        kh = qkv_bf[:, E + lo:E + lo + hd]           # (BT, hd)
        vh = qkv_bf[:, 2 * E + lo:2 * E + lo + hd]   # (BT, hd)
        s = jax.lax.dot_general(qh, kh, (((1,), (1,)), ((), ())),
                                preferred_element_type=f32)            # (BT, BT)
        s = jnp.where(valid, s, -1e9)                # replace (matches reference)
        s = s - jnp.max(s, axis=-1, keepdims=True)
        p = jnp.exp(s)
        p = p * pl.reciprocal(jnp.sum(p, axis=-1, keepdims=True), approx=True)
        o_scr[:, lo:lo + hd] = jnp.dot(p.astype(bf16), vh,
                                       preferred_element_type=f32)     # (BT, hd)

    attn = mm(o_scr[...].astype(bf16), w_o) + b_o                      # (BT, E)

    # ---- two branches ---------------------------------------------------------
    x1 = jnp.maximum(mm(attn.astype(bf16), w_attn) + b_attn, 0.0)      # (BT, H)
    x2 = jnp.maximum(mm(x_emb_bf, w_rnn) + b_rnn, 0.0)                 # (BT, H)

    # ---- GRU cell, gate matmuls fused ([r|z|n] packing, PyTorch semantics) ---
    gi = mm(x2.astype(bf16), w_gi) + b_gi                              # (BT, 3H)
    gh = mm(h_in.astype(bf16), w_gh) + b_gh                            # (BT, 3H)
    r = jax.nn.sigmoid(gi[:, 0:H] + gh[:, 0:H])
    z = jax.nn.sigmoid(gi[:, H:2 * H] + gh[:, H:2 * H])
    n = jnp.tanh(gi[:, 2 * H:3 * H] + r * gh[:, 2 * H:3 * H])
    h_new = (1.0 - z) * n + z * h_in                                   # (BT, H)
    h_out_ref[...] = h_new        # (BT, H); (B, T, H) reshape is done in wrapper

    # ---- action head (concat-free: fc weight split host-side) ----------------
    q_all = mm(x1.astype(bf16), w_fc1) + mm(h_new.astype(bf16), w_fc2) + b_fc

    # ---- final assembly: ONE trans_b matmul gives every token's action mean;
    #      then direct static sublane/lane slice stores into q_ref
    #      (no per-batch tiny dots, no lane concatenates).
    ones_over_a = jnp.full((1, A), 1.0 / A, f32)
    token_means = jax.lax.dot_general(ones_over_a, q_all,
                                      (((1,), (1,)), ((), ())),
                                      preferred_element_type=f32)      # (1, BT)
    for b in range(B):
        base = b * T
        q_ref[b:b + 1, 0:A] = q_all[base:base + 1, :]                  # self actions
        col = A
        if enemy_wise:
            q_ref[b:b + 1, col:col + n_enemies] = \
                token_means[:, base + 1:base + 1 + n_enemies]
            col += n_enemies
        if ally_wise:
            na = n_agents - 1
            q_ref[b:b + 1, col:col + na] = \
                token_means[:, base + T - na:base + T]


# ----------------------------------------------------------------------------
# Host-side weight packing (checkpoint-style params -> 1 bf16 + 1 f32 slab)
# ----------------------------------------------------------------------------
def pack_params(params, args=Args):
    E, H, A = args.emb_dim, args.rnn_hidden_dim, args.n_fixed_actions
    assert E == H, "packing assumes emb_dim == rnn_hidden_dim"
    d_in = params["w_emb"].shape[0]
    hd = E // args.n_heads
    scale = 1.0 / math.sqrt(hd)
    W = 3 * E
    off, d_in_p = _slab_rows(d_in, E, H)

    def pad_lanes(w):
        return jnp.pad(w, ((0, 0), (0, W - w.shape[1])))

    def pad_rows(w, rows):
        return jnp.pad(w, ((0, rows - w.shape[0]), (0, 0)))

    # fold the attention score scale 1/sqrt(hd) into the Q projection
    w_q = params["w_q"] * scale
    b_q = params["b_q"] * scale

    w_qkv = jnp.concatenate([w_q, params["w_k"], params["w_v"]], axis=1)
    b_qkv = jnp.concatenate([b_q, params["b_k"], params["b_v"]], axis=1)
    w_gi = jnp.concatenate([params["w_ir"], params["w_iz"], params["w_in"]], axis=1)
    b_gi = jnp.concatenate([params["b_ir"], params["b_iz"], params["b_in"]], axis=1)
    w_gh = jnp.concatenate([params["w_hr"], params["w_hz"], params["w_hn"]], axis=1)
    b_gh = jnp.concatenate([params["b_hr"], params["b_hz"], params["b_hn"]], axis=1)

    w_slab = jnp.concatenate([
        w_qkv,                                          # rows off["qkv"]
        w_gi,                                           # rows off["gi"]
        w_gh,                                           # rows off["gh"]
        pad_lanes(pad_rows(params["w_emb"], d_in_p)),   # rows off["emb"]
        pad_lanes(params["w_o"]),                       # rows off["o"]
        pad_lanes(params["w_attn"]),                    # rows off["attn"]
        pad_lanes(params["w_rnn"]),                     # rows off["rnn"]
        pad_lanes(params["w_fc"]),                      # rows off["fc1"]/off["fc2"]
    ], axis=0).astype(jnp.bfloat16)
    assert w_slab.shape == (off["end"], W)

    bias = jnp.concatenate([
        pad_lanes(params["b_emb"]), b_qkv, pad_lanes(params["b_o"]),
        pad_lanes(params["b_attn"]), pad_lanes(params["b_rnn"]),
        b_gi, b_gh, pad_lanes(params["b_fc"]),
    ], axis=0).astype(jnp.float32)                      # (8, 3E)

    return {"w": w_slab, "bias": bias}


# ----------------------------------------------------------------------------
# Wrapper
# ----------------------------------------------------------------------------
@functools.partial(jax.jit, static_argnames=("args",))
def token_wise_branch_attn_forward(packed, x, mask, hidden_state, args=Args):
    b, t, d_in = x.shape
    E, H, A = args.emb_dim, args.rnn_hidden_dim, args.n_fixed_actions
    nq = A + (args.n_enemies if args.action_enemy_wise else 0) \
           + ((args.n_agents - 1) if args.action_ally_wise else 0)
    bt = b * t

    # "may attend" matrix: block-diagonal over batch AND key-padding mask,
    # computed once in XLA (fuses with the reshapes below).  Passing this
    # instead of the raw mask keeps the DMA count at 5 and removes all
    # iota / integer-div work from the kernel.
    bids = jnp.repeat(jnp.arange(b, dtype=jnp.int32), t)
    valid = (bids[:, None] == bids[None, :]) & (mask.reshape(bt) > 0)[None, :]
    valid = valid.astype(jnp.float32)                                   # (BT, BT)

    kernel = functools.partial(
        agent_kernel, batch=b, tokens=t, d_in=d_in, emb_dim=E,
        n_heads=args.n_heads, hidden_dim=H, n_actions=A,
        n_enemies=args.n_enemies, n_agents=args.n_agents,
        enemy_wise=args.action_enemy_wise, ally_wise=args.action_ally_wise)

    vmem = pltpu.MemorySpace.VMEM
    # Whole problem in one invocation (BT rows on sublanes): no per-grid-step
    # overhead.  For stacked/large batches (the real perf lever), add a leading
    # "parallel" grid axis so v7x's two TensorCores are both used.
    q, h_flat = pl.pallas_call(
        kernel,
        out_shape=(jax.ShapeDtypeStruct((b, nq), jnp.float32),
                   jax.ShapeDtypeStruct((bt, H), jnp.float32)),
        in_specs=[pl.BlockSpec(memory_space=vmem)] * 5,
        out_specs=(pl.BlockSpec(memory_space=vmem),
                   pl.BlockSpec(memory_space=vmem)),
        scratch_shapes=[pltpu.VMEM((bt, E), jnp.float32)],
    )(x.reshape(bt, d_in).astype(jnp.float32),
      valid,
      hidden_state.reshape(bt, H).astype(jnp.float32),
      packed["w"], packed["bias"])
    return q, h_flat.reshape(b, t, H)


# ----------------------------------------------------------------------------
# Pure-JAX reference (mirrors the PyTorch forward).  `mm_dtype=bfloat16`
# mirrors the kernel's mixed-precision matmuls for a tight structural check.
# ----------------------------------------------------------------------------
def reference_forward(params, x, mask, hidden_state, args=Args, mm_dtype=None):
    f32 = jnp.float32
    cast = (lambda a: a.astype(mm_dtype)) if mm_dtype is not None else (lambda a: a)

    def lin(a, w, bias):
        return jnp.dot(cast(a), cast(w), preferred_element_type=f32) + bias

    b, t, _ = x.shape
    H = args.rnn_hidden_dim
    nh, hd = args.n_heads, args.emb_dim // args.n_heads

    xe = jax.nn.relu(lin(x, params["w_emb"], params["b_emb"]))

    q = lin(xe, params["w_q"], params["b_q"]).reshape(b, t, nh, hd).transpose(0, 2, 1, 3)
    k = lin(xe, params["w_k"], params["b_k"]).reshape(b, t, nh, hd).transpose(0, 2, 1, 3)
    v = lin(xe, params["w_v"], params["b_v"]).reshape(b, t, nh, hd).transpose(0, 2, 1, 3)
    s = jnp.einsum("bhqd,bhkd->bhqk", cast(q), cast(k),
                   preferred_element_type=f32) / math.sqrt(hd)
    s = jnp.where(mask[:, None, None, :] > 0, s, -1e9)
    p = jax.nn.softmax(s, axis=-1)
    attn = jnp.einsum("bhqk,bhkd->bhqd", cast(p), cast(v),
                      preferred_element_type=f32)
    attn = attn.transpose(0, 2, 1, 3).reshape(b, t, -1)
    attn = lin(attn, params["w_o"], params["b_o"])

    x1 = jax.nn.relu(lin(attn, params["w_attn"], params["b_attn"]))
    x2 = jax.nn.relu(lin(xe, params["w_rnn"], params["b_rnn"]))
    h_in = hidden_state.reshape(b, t, H)

    r = jax.nn.sigmoid(lin(x2, params["w_ir"], params["b_ir"])
                       + lin(h_in, params["w_hr"], params["b_hr"]))
    z = jax.nn.sigmoid(lin(x2, params["w_iz"], params["b_iz"])
                       + lin(h_in, params["w_hz"], params["b_hz"]))
    n = jnp.tanh(lin(x2, params["w_in"], params["b_in"])
                 + r * (lin(h_in, params["w_hn"], params["b_hn"])))
    h = (1.0 - z) * n + z * h_in

    x3 = jnp.concatenate([x1, h], axis=-1)
    q_all = lin(x3, params["w_fc"], params["b_fc"])

    q_out = q_all[:, 0, :]
    if args.action_enemy_wise:
        q_out = jnp.concatenate(
            [q_out, q_all[:, 1:args.n_enemies + 1, :].mean(axis=2)], axis=1)
    if args.action_ally_wise:
        q_out = jnp.concatenate(
            [q_out, q_all[:, -(args.n_agents - 1):, :].mean(axis=2)], axis=1)
    return q_out, h


# ----------------------------------------------------------------------------
# Deterministic parameter construction (checkpoint-style, unpacked, f32)
# ----------------------------------------------------------------------------
def make_params(key, args=Args, input_shape=INPUT_SHAPE):
    E, H, A = args.emb_dim, args.rnn_hidden_dim, args.n_fixed_actions
    shapes = {
        "w_emb": (input_shape, E), "b_emb": (1, E),
        "w_q": (E, E), "b_q": (1, E),
        "w_k": (E, E), "b_k": (1, E),
        "w_v": (E, E), "b_v": (1, E),
        "w_o": (E, E), "b_o": (1, E),
        "w_attn": (E, H), "b_attn": (1, H),
        "w_rnn": (E, H), "b_rnn": (1, H),
        "w_ir": (H, H), "w_iz": (H, H), "w_in": (H, H),
        "b_ir": (1, H), "b_iz": (1, H), "b_in": (1, H),
        "w_hr": (H, H), "w_hz": (H, H), "w_hn": (H, H),
        "b_hr": (1, H), "b_hz": (1, H), "b_hn": (1, H),
        "w_fc": (2 * H, A), "b_fc": (1, A),
    }
    params = {}
    keys = jax.random.split(key, len(shapes))
    for (name, shape), k in zip(shapes.items(), keys):
        fan_in = shape[0] if name.startswith("w") else shape[1]
        params[name] = (jax.random.normal(k, shape, jnp.float32)
                        * (1.0 / math.sqrt(fan_in)))
    return params


# ----------------------------------------------------------------------------
if __name__ == "__main__":
    key = jax.random.PRNGKey(0)
    k_param, k_x, k_h = jax.random.split(key, 3)

    params = make_params(k_param)
    packed = pack_params(params)

    x = jax.random.normal(k_x, (BATCH, TOKENS, INPUT_SHAPE), jnp.float32)
    # key-padding mask: 1 = valid token; mask out the last token of batch 1
    mask = jnp.ones((BATCH, TOKENS), jnp.float32).at[1, -1].set(0.0)
    hidden = jax.random.normal(k_h, (BATCH, TOKENS, Args.rnn_hidden_dim),
                               jnp.float32) * 0.1

    q, h = token_wise_branch_attn_forward(packed, x, mask, hidden, args=Args)
    q = jax.block_until_ready(q)
    h = jax.block_until_ready(h)

    assert q.shape == (BATCH, Args.n_fixed_actions + Args.n_enemies
                       + Args.n_agents - 1)
    assert h.shape == (BATCH, TOKENS, Args.rnn_hidden_dim)

    # structural check vs a reference that mirrors the bf16 matmul operands
    q_bf, h_bf = reference_forward(params, x, mask, hidden,
                                   mm_dtype=jnp.bfloat16)
    assert jnp.allclose(q, q_bf, atol=1e-2, rtol=1e-2), \
        f"q vs bf16 ref: max diff {jnp.max(jnp.abs(q - q_bf))}"
    assert jnp.allclose(h, h_bf, atol=1e-2, rtol=1e-2), \
        f"h vs bf16 ref: max diff {jnp.max(jnp.abs(h - h_bf))}"

    # end-to-end check vs the full-f32 reference (tolerance reflects bf16 MXU
    # operands + approximate softmax reciprocal)
    q_ref, h_ref = reference_forward(params, x, mask, hidden)
    assert jnp.allclose(q, q_ref, atol=5e-2, rtol=5e-2), \
        f"q vs f32 ref: max diff {jnp.max(jnp.abs(q - q_ref))}"
    assert jnp.allclose(h, h_ref, atol=5e-2, rtol=5e-2), \
        f"h vs f32 ref: max diff {jnp.max(jnp.abs(h - h_ref))}"

    print("KERNEL_OK")
</pallas_src>

<mosaic_0001>
module attributes {stable_mosaic.version = 11 : i64} {
  func.func @agent_kernel(%arg0: memref<16x16xf32, #tpu.memory_space<vmem>>, %arg1: memref<16x16xf32, #tpu.memory_space<vmem>>, %arg2: memref<16x32xf32, #tpu.memory_space<vmem>>, %arg3: memref<272x96xbf16, #tpu.memory_space<vmem>>, %arg4: memref<8x96xf32, #tpu.memory_space<vmem>>, %arg5: memref<2x13xf32, #tpu.memory_space<vmem>>, %arg6: memref<16x32xf32, #tpu.memory_space<vmem>>, %arg7: memref<16x32xf32, #tpu.memory_space<vmem>>) attributes {dimension_semantics = [], scalar_prefetch = 0 : i64, scratch_operands = 1 : i64, tpu.core_type = #tpu.core_type<tc>} {
    %c0 = arith.constant 0 : index
    %c0_0 = arith.constant 0 : index
    %0 = vector.load %arg3[%c0, %c0_0] : memref<272x96xbf16, #tpu.memory_space<vmem>>, vector<32x96xbf16>
    %c32 = arith.constant 32 : index
    %c0_1 = arith.constant 0 : index
    %1 = vector.load %arg3[%c32, %c0_1] : memref<272x96xbf16, #tpu.memory_space<vmem>>, vector<32x96xbf16>
    %c64 = arith.constant 64 : index
    %c0_2 = arith.constant 0 : index
    %2 = vector.load %arg3[%c64, %c0_2] : memref<272x96xbf16, #tpu.memory_space<vmem>>, vector<32x96xbf16>
    %c96 = arith.constant 96 : index
    %c0_3 = arith.constant 0 : index
    %3 = vector.load %arg3[%c96, %c0_3] : memref<272x96xbf16, #tpu.memory_space<vmem>>, vector<16x32xbf16>
    %c112 = arith.constant 112 : index
    %c0_4 = arith.constant 0 : index
    %4 = vector.load %arg3[%c112, %c0_4] : memref<272x96xbf16, #tpu.memory_space<vmem>>, vector<32x32xbf16>
    %c144 = arith.constant 144 : index
    %c0_5 = arith.constant 0 : index
    %5 = vector.load %arg3[%c144, %c0_5] : memref<272x96xbf16, #tpu.memory_space<vmem>>, vector<32x32xbf16>
    %c176 = arith.constant 176 : index
    %c0_6 = arith.constant 0 : index
    %6 = vector.load %arg3[%c176, %c0_6] : memref<272x96xbf16, #tpu.memory_space<vmem>>, vector<32x32xbf16>
    %c208 = arith.constant 208 : index
    %c0_7 = arith.constant 0 : index
    %7 = vector.load %arg3[%c208, %c0_7] : memref<272x96xbf16, #tpu.memory_space<vmem>>, vector<32x6xbf16>
    %c240 = arith.constant 240 : index
    %c0_8 = arith.constant 0 : index
    %8 = vector.load %arg3[%c240, %c0_8] : memref<272x96xbf16, #tpu.memory_space<vmem>>, vector<32x6xbf16>
    %c0_9 = arith.constant 0 : index
    %c0_10 = arith.constant 0 : index
    %9 = vector.load %arg4[%c0_9, %c0_10] : memref<8x96xf32, #tpu.memory_space<vmem>>, vector<1x32xf32>
    %c1 = arith.constant 1 : index
    %c0_11 = arith.constant 0 : index
    %10 = vector.load %arg4[%c1, %c0_11] : memref<8x96xf32, #tpu.memory_space<vmem>>, vector<1x96xf32>
    %c2 = arith.constant 2 : index
    %c0_12 = arith.constant 0 : index
    %11 = vector.load %arg4[%c2, %c0_12] : memref<8x96xf32, #tpu.memory_space<vmem>>, vector<1x32xf32>
    %c3 = arith.constant 3 : index
    %c0_13 = arith.constant 0 : index
    %12 = vector.load %arg4[%c3, %c0_13] : memref<8x96xf32, #tpu.memory_space<vmem>>, vector<1x32xf32>
    %c4 = arith.constant 4 : index
    %c0_14 = arith.constant 0 : index
    %13 = vector.load %arg4[%c4, %c0_14] : memref<8x96xf32, #tpu.memory_space<vmem>>, vector<1x32xf32>
    %c5 = arith.constant 5 : index
    %c0_15 = arith.constant 0 : index
    %14 = vector.load %arg4[%c5, %c0_15] : memref<8x96xf32, #tpu.memory_space<vmem>>, vector<1x96xf32>
    %c6 = arith.constant 6 : index
    %c0_16 = arith.constant 0 : index
    %15 = vector.load %arg4[%c6, %c0_16] : memref<8x96xf32, #tpu.memory_space<vmem>>, vector<1x96xf32>
    %c7 = arith.constant 7 : index
    %c0_17 = arith.constant 0 : index
    %16 = vector.load %arg4[%c7, %c0_17] : memref<8x96xf32, #tpu.memory_space<vmem>>, vector<1x6xf32>
    %c0_18 = arith.constant 0 : index
    %c0_19 = arith.constant 0 : index
    %17 = vector.load %arg0[%c0_18, %c0_19] : memref<16x16xf32, #tpu.memory_space<vmem>>, vector<16x16xf32>
    %c0_20 = arith.constant 0 : index
    %c0_21 = arith.constant 0 : index
    %18 = vector.load %arg1[%c0_20, %c0_21] : memref<16x16xf32, #tpu.memory_space<vmem>>, vector<16x16xf32>
    %cst = arith.constant 0.000000e+00 : f32
    %19 = vector.broadcast %cst : f32 to vector<16x16xf32>
    %20 = arith.cmpf ogt, %18, %19 : vector<16x16xf32>
    %c0_22 = arith.constant 0 : index
    %c0_23 = arith.constant 0 : index
    %21 = vector.load %arg2[%c0_22, %c0_23] : memref<16x32xf32, #tpu.memory_space<vmem>>, vector<16x32xf32>
    %22 = arith.truncf %17 : vector<16x16xf32> to vector<16x16xbf16>
    %cst_24 = arith.constant dense<0.000000e+00> : vector<16x32xf32>
    %23 = tpu.matmul %22, %3, %cst_24 {dimension_numbers = #tpu.dot_dimension_numbers<[1], [0], [0], [1], [0, 0, 1, 1], [], []>} : vector<16x16xbf16>, vector<16x32xbf16>, vector<16x32xf32> -> vector<16x32xf32>
    %24 = vector.broadcast %9 : vector<1x32xf32> to vector<16x32xf32>
    %25 = arith.addf %23, %24 : vector<16x32xf32>
    %cst_25 = arith.constant 0.000000e+00 : f32
    %26 = vector.broadcast %cst_25 : f32 to vector<16x32xf32>
    %27 = arith.maximumf %25, %26 : vector<16x32xf32>
    %28 = arith.truncf %27 : vector<16x32xf32> to vector<16x32xbf16>
    %cst_26 = arith.constant dense<0.000000e+00> : vector<16x96xf32>
    %29 = tpu.matmul %28, %0, %cst_26 {dimension_numbers = #tpu.dot_dimension_numbers<[1], [0], [0], [1], [0, 0, 1, 1], [], []>} : vector<16x32xbf16>, vector<32x96xbf16>, vector<16x96xf32> -> vector<16x96xf32>
    %30 = vector.broadcast %10 : vector<1x96xf32> to vector<16x96xf32>
    %31 = arith.addf %29, %30 : vector<16x96xf32>
    %32 = arith.truncf %31 : vector<16x96xf32> to vector<16x96xbf16>
    %33 = vector.extract_strided_slice %32 {offsets = [0, 0], sizes = [16, 8], strides = [1, 1]} : vector<16x96xbf16> to vector<16x8xbf16>
    %34 = vector.extract_strided_slice %32 {offsets = [0, 32], sizes = [16, 8], strides = [1, 1]} : vector<16x96xbf16> to vector<16x8xbf16>
    %35 = vector.extract_strided_slice %32 {offsets = [0, 64], sizes = [16, 8], strides = [1, 1]} : vector<16x96xbf16> to vector<16x8xbf16>
    %cst_27 = arith.constant dense<0.000000e+00> : vector<16x16xf32>
    %36 = tpu.matmul %33, %34, %cst_27 {dimension_numbers = #tpu.dot_dimension_numbers<[1], [1], [0], [0], [0, 0, 1, 0], [], []>} : vector<16x8xbf16>, vector<16x8xbf16>, vector<16x16xf32> -> vector<16x16xf32>
    %cst_28 = arith.constant -1.000000e+09 : f32
    %37 = vector.broadcast %cst_28 : f32 to vector<16x16xf32>
    %38 = arith.select %20, %36, %37 : vector<16x16xi1>, vector<16x16xf32>
    %cst_29 = arith.constant dense<0xFF800000> : vector<16xf32>
    %39 = vector.multi_reduction <maximumf>, %38, %cst_29 [1] : vector<16x16xf32> to vector<16xf32>
    %40 = vector.shape_cast %39 : vector<16xf32> to vector<16x1xf32>
    %41 = vector.broadcast %40 : vector<16x1xf32> to vector<16x16xf32>
    %42 = arith.subf %38, %41 : vector<16x16xf32>
    %43 = math.exp %42 : vector<16x16xf32>
    %cst_30 = arith.constant dense<0.000000e+00> : vector<16xf32>
    %44 = vector.multi_reduction <add>, %43, %cst_30 [1] : vector<16x16xf32> to vector<16xf32>
    %45 = vector.shape_cast %44 : vector<16xf32> to vector<16x1xf32>
    %46 = tpu.reciprocal %45 {approx = true} : vector<16x1xf32> -> vector<16x1xf32>
    %47 = vector.broadcast %46 : vector<16x1xf32> to vector<16x16xf32>
    %48 = arith.mulf %43, %47 : vector<16x16xf32>
    %49 = arith.truncf %48 : vector<16x16xf32> to vector<16x16xbf16>
    %cst_31 = arith.constant dense<0.000000e+00> : vector<16x8xf32>
    %50 = tpu.matmul %49, %35, %cst_31 {dimension_numbers = #tpu.dot_dimension_numbers<[1], [0], [0], [1], [0, 0, 1, 1], [], []>} : vector<16x16xbf16>, vector<16x8xbf16>, vector<16x8xf32> -> vector<16x8xf32>
    %c0_32 = arith.constant 0 : index
    %c0_33 = arith.constant 0 : index
    %51 = vector.load %arg7[%c0_32, %c0_33] : memref<16x32xf32, #tpu.memory_space<vmem>>, vector<16x8xf32>
    tpu.vector_store %arg7[%c0_32, %c0_33], %50 {strides = array<i32>} : memref<16x32xf32, #tpu.memory_space<vmem>>, vector<16x8xf32>,
    %52 = vector.extract_strided_slice %32 {offsets = [0, 8], sizes = [16, 8], strides = [1, 1]} : vector<16x96xbf16> to vector<16x8xbf16>
    %53 = vector.extract_strided_slice %32 {offsets = [0, 40], sizes = [16, 8], strides = [1, 1]} : vector<16x96xbf16> to vector<16x8xbf16>
    %54 = vector.extract_strided_slice %32 {offsets = [0, 72], sizes = [16, 8], strides = [1, 1]} : vector<16x96xbf16> to vector<16x8xbf16>
    %cst_34 = arith.constant dense<0.000000e+00> : vector<16x16xf32>
    %55 = tpu.matmul %52, %53, %cst_34 {dimension_numbers = #tpu.dot_dimension_numbers<[1], [1], [0], [0], [0, 0, 1, 0], [], []>} : vector<16x8xbf16>, vector<16x8xbf16>, vector<16x16xf32> -> vector<16x16xf32>
    %cst_35 = arith.constant -1.000000e+09 : f32
    %56 = vector.broadcast %cst_35 : f32 to vector<16x16xf32>
    %57 = arith.select %20, %55, %56 : vector<16x16xi1>, vector<16x16xf32>
    %cst_36 = arith.constant dense<0xFF800000> : vector<16xf32>
    %58 = vector.multi_reduction <maximumf>, %57, %cst_36 [1] : vector<16x16xf32> to vector<16xf32>
    %59 = vector.shape_cast %58 : vector<16xf32> to vector<16x1xf32>
    %60 = vector.broadcast %59 : vector<16x1xf32> to vector<16x16xf32>
    %61 = arith.subf %57, %60 : vector<16x16xf32>
    %62 = math.exp %61 : vector<16x16xf32>
    %cst_37 = arith.constant dense<0.000000e+00> : vector<16xf32>
    %63 = vector.multi_reduction <add>, %62, %cst_37 [1] : vector<16x16xf32> to vector<16xf32>
    %64 = vector.shape_cast %63 : vector<16xf32> to vector<16x1xf32>
    %65 = tpu.reciprocal %64 {approx = true} : vector<16x1xf32> -> vector<16x1xf32>
    %66 = vector.broadcast %65 : vector<16x1xf32> to vector<16x16xf32>
    %67 = arith.mulf %62, %66 : vector<16x16xf32>
    %68 = arith.truncf %67 : vector<16x16xf32> to vector<16x16xbf16>
    %cst_38 = arith.constant dense<0.000000e+00> : vector<16x8xf32>
    %69 = tpu.matmul %68, %54, %cst_38 {dimension_numbers = #tpu.dot_dimension_numbers<[1], [0], [0], [1], [0, 0, 1, 1], [], []>} : vector<16x16xbf16>, vector<16x8xbf16>, vector<16x8xf32> -> vector<16x8xf32>
    %c0_39 = arith.constant 0 : index
    %c8 = arith.constant 8 : index
    %70 = vector.load %arg7[%c0_39, %c8] : memref<16x32xf32, #tpu.memory_space<vmem>>, vector<16x8xf32>
    tpu.vector_store %arg7[%c0_39, %c8], %69 {strides = array<i32>} : memref<16x32xf32, #tpu.memory_space<vmem>>, vector<16x8xf32>,
    %71 = vector.extract_strided_slice %32 {offsets = [0, 16], sizes = [16, 8], strides = [1, 1]} : vector<16x96xbf16> to vector<16x8xbf16>
    %72 = vector.extract_strided_slice %32 {offsets = [0, 48], sizes = [16, 8], strides = [1, 1]} : vector<16x96xbf16> to vector<16x8xbf16>
    %73 = vector.extract_strided_slice %32 {offsets = [0, 80], sizes = [16, 8], strides = [1, 1]} : vector<16x96xbf16> to vector<16x8xbf16>
    %cst_40 = arith.constant dense<0.000000e+00> : vector<16x16xf32>
    %74 = tpu.matmul %71, %72, %cst_40 {dimension_numbers = #tpu.dot_dimension_numbers<[1], [1], [0], [0], [0, 0, 1, 0], [], []>} : vector<16x8xbf16>, vector<16x8xbf16>, vector<16x16xf32> -> vector<16x16xf32>
    %cst_41 = arith.constant -1.000000e+09 : f32
    %75 = vector.broadcast %cst_41 : f32 to vector<16x16xf32>
    %76 = arith.select %20, %74, %75 : vector<16x16xi1>, vector<16x16xf32>
    %cst_42 = arith.constant dense<0xFF800000> : vector<16xf32>
    %77 = vector.multi_reduction <maximumf>, %76, %cst_42 [1] : vector<16x16xf32> to vector<16xf32>
    %78 = vector.shape_cast %77 : vector<16xf32> to vector<16x1xf32>
    %79 = vector.broadcast %78 : vector<16x1xf32> to vector<16x16xf32>
    %80 = arith.subf %76, %79 : vector<16x16xf32>
    %81 = math.exp %80 : vector<16x16xf32>
    %cst_43 = arith.constant dense<0.000000e+00> : vector<16xf32>
    %82 = vector.multi_reduction <add>, %81, %cst_43 [1] : vector<16x16xf32> to vector<16xf32>
    %83 = vector.shape_cast %82 : vector<16xf32> to vector<16x1xf32>
    %84 = tpu.reciprocal %83 {approx = true} : vector<16x1xf32> -> vector<16x1xf32>
    %85 = vector.broadcast %84 : vector<16x1xf32> to vector<16x16xf32>
    %86 = arith.mulf %81, %85 : vector<16x16xf32>
    %87 = arith.truncf %86 : vector<16x16xf32> to vector<16x16xbf16>
    %cst_44 = arith.constant dense<0.000000e+00> : vector<16x8xf32>
    %88 = tpu.matmul %87, %73, %cst_44 {dimension_numbers = #tpu.dot_dimension_numbers<[1], [0], [0], [1], [0, 0, 1, 1], [], []>} : vector<16x16xbf16>, vector<16x8xbf16>, vector<16x8xf32> -> vector<16x8xf32>
    %c0_45 = arith.constant 0 : index
    %c16 = arith.constant 16 : index
    %89 = vector.load %arg7[%c0_45, %c16] : memref<16x32xf32, #tpu.memory_space<vmem>>, vector<16x8xf32>
    tpu.vector_store %arg7[%c0_45, %c16], %88 {strides = array<i32>} : memref<16x32xf32, #tpu.memory_space<vmem>>, vector<16x8xf32>,
    %90 = vector.extract_strided_slice %32 {offsets = [0, 24], sizes = [16, 8], strides = [1, 1]} : vector<16x96xbf16> to vector<16x8xbf16>
    %91 = vector.extract_strided_slice %32 {offsets = [0, 56], sizes = [16, 8], strides = [1, 1]} : vector<16x96xbf16> to vector<16x8xbf16>
    %92 = vector.extract_strided_slice %32 {offsets = [0, 88], sizes = [16, 8], strides = [1, 1]} : vector<16x96xbf16> to vector<16x8xbf16>
    %cst_46 = arith.constant dense<0.000000e+00> : vector<16x16xf32>
    %93 = tpu.matmul %90, %91, %cst_46 {dimension_numbers = #tpu.dot_dimension_numbers<[1], [1], [0], [0], [0, 0, 1, 0], [], []>} : vector<16x8xbf16>, vector<16x8xbf16>, vector<16x16xf32> -> vector<16x16xf32>
    %cst_47 = arith.constant -1.000000e+09 : f32
    %94 = vector.broadcast %cst_47 : f32 to vector<16x16xf32>
    %95 = arith.select %20, %93, %94 : vector<16x16xi1>, vector<16x16xf32>
    %cst_48 = arith.constant dense<0xFF800000> : vector<16xf32>
    %96 = vector.multi_reduction <maximumf>, %95, %cst_48 [1] : vector<16x16xf32> to vector<16xf32>
    %97 = vector.shape_cast %96 : vector<16xf32> to vector<16x1xf32>
    %98 = vector.broadcast %97 : vector<16x1xf32> to vector<16x16xf32>
    %99 = arith.subf %95, %98 : vector<16x16xf32>
    %100 = math.exp %99 : vector<16x16xf32>
    %cst_49 = arith.constant dense<0.000000e+00> : vector<16xf32>
    %101 = vector.multi_reduction <add>, %100, %cst_49 [1] : vector<16x16xf32> to vector<16xf32>
    %102 = vector.shape_cast %101 : vector<16xf32> to vector<16x1xf32>
    %103 = tpu.reciprocal %102 {approx = true} : vector<16x1xf32> -> vector<16x1xf32>
    %104 = vector.broadcast %103 : vector<16x1xf32> to vector<16x16xf32>
    %105 = arith.mulf %100, %104 : vector<16x16xf32>
    %106 = arith.truncf %105 : vector<16x16xf32> to vector<16x16xbf16>
    %cst_50 = arith.constant dense<0.000000e+00> : vector<16x8xf32>
    %107 = tpu.matmul %106, %92, %cst_50 {dimension_numbers = #tpu.dot_dimension_numbers<[1], [0], [0], [1], [0, 0, 1, 1], [], []>} : vector<16x16xbf16>, vector<16x8xbf16>, vector<16x8xf32> -> vector<16x8xf32>
    %c0_51 = arith.constant 0 : index
    %c24 = arith.constant 24 : index
    %108 = vector.load %arg7[%c0_51, %c24] : memref<16x32xf32, #tpu.memory_space<vmem>>, vector<16x8xf32>
    tpu.vector_store %arg7[%c0_51, %c24], %107 {strides = array<i32>} : memref<16x32xf32, #tpu.memory_space<vmem>>, vector<16x8xf32>,
    %c0_52 = arith.constant 0 : index
    %c0_53 = arith.constant 0 : index
    %109 = vector.load %arg7[%c0_52, %c0_53] : memref<16x32xf32, #tpu.memory_space<vmem>>, vector<16x32xf32>
    %110 = arith.truncf %109 : vector<16x32xf32> to vector<16x32xbf16>
    %cst_54 = arith.constant dense<0.000000e+00> : vector<16x32xf32>
    %111 = tpu.matmul %110, %4, %cst_54 {dimension_numbers = #tpu.dot_dimension_numbers<[1], [0], [0], [1], [0, 0, 1, 1], [], []>} : vector<16x32xbf16>, vector<32x32xbf16>, vector<16x32xf32> -> vector<16x32xf32>
    %112 = vector.broadcast %11 : vector<1x32xf32> to vector<16x32xf32>
    %113 = arith.addf %111, %112 : vector<16x32xf32>
    %114 = arith.truncf %113 : vector<16x32xf32> to vector<16x32xbf16>
    %cst_55 = arith.constant dense<0.000000e+00> : vector<16x32xf32>
    %115 = tpu.matmul %114, %5, %cst_55 {dimension_numbers = #tpu.dot_dimension_numbers<[1], [0], [0], [1], [0, 0, 1, 1], [], []>} : vector<16x32xbf16>, vector<32x32xbf16>, vector<16x32xf32> -> vector<16x32xf32>
    %116 = vector.broadcast %12 : vector<1x32xf32> to vector<16x32xf32>
    %117 = arith.addf %115, %116 : vector<16x32xf32>
    %cst_56 = arith.constant 0.000000e+00 : f32
    %118 = vector.broadcast %cst_56 : f32 to vector<16x32xf32>
    %119 = arith.maximumf %117, %118 : vector<16x32xf32>
    %cst_57 = arith.constant dense<0.000000e+00> : vector<16x32xf32>
    %120 = tpu.matmul %28, %6, %cst_57 {dimension_numbers = #tpu.dot_dimension_numbers<[1], [0], [0], [1], [0, 0, 1, 1], [], []>} : vector<16x32xbf16>, vector<32x32xbf16>, vector<16x32xf32> -> vector<16x32xf32>
    %121 = vector.broadcast %13 : vector<1x32xf32> to vector<16x32xf32>
    %122 = arith.addf %120, %121 : vector<16x32xf32>
    %cst_58 = arith.constant 0.000000e+00 : f32
    %123 = vector.broadcast %cst_58 : f32 to vector<16x32xf32>
    %124 = arith.maximumf %122, %123 : vector<16x32xf32>
    %125 = arith.truncf %124 : vector<16x32xf32> to vector<16x32xbf16>
    %cst_59 = arith.constant dense<0.000000e+00> : vector<16x96xf32>
    %126 = tpu.matmul %125, %1, %cst_59 {dimension_numbers = #tpu.dot_dimension_numbers<[1], [0], [0], [1], [0, 0, 1, 1], [], []>} : vector<16x32xbf16>, vector<32x96xbf16>, vector<16x96xf32> -> vector<16x96xf32>
    %127 = vector.broadcast %14 : vector<1x96xf32> to vector<16x96xf32>
    %128 = arith.addf %126, %127 : vector<16x96xf32>
    %129 = arith.truncf %21 : vector<16x32xf32> to vector<16x32xbf16>
    %cst_60 = arith.constant dense<0.000000e+00> : vector<16x96xf32>
    %130 = tpu.matmul %129, %2, %cst_60 {dimension_numbers = #tpu.dot_dimension_numbers<[1], [0], [0], [1], [0, 0, 1, 1], [], []>} : vector<16x32xbf16>, vector<32x96xbf16>, vector<16x96xf32> -> vector<16x96xf32>
    %131 = vector.broadcast %15 : vector<1x96xf32> to vector<16x96xf32>
    %132 = arith.addf %130, %131 : vector<16x96xf32>
    %133 = vector.extract_strided_slice %128 {offsets = [0, 0], sizes = [16, 32], strides = [1, 1]} : vector<16x96xf32> to vector<16x32xf32>
    %134 = vector.extract_strided_slice %132 {offsets = [0, 0], sizes = [16, 32], strides = [1, 1]} : vector<16x96xf32> to vector<16x32xf32>
    %135 = arith.addf %133, %134 : vector<16x32xf32>
    %136 = arith.negf %135 : vector<16x32xf32>
    %137 = math.exp %136 : vector<16x32xf32>
    %cst_61 = arith.constant 1.000000e+00 : f32
    %138 = vector.broadcast %cst_61 : f32 to vector<16x32xf32>
    %139 = arith.addf %138, %137 : vector<16x32xf32>
    %140 = arith.divf %138, %139 : vector<16x32xf32>
    %141 = vector.extract_strided_slice %128 {offsets = [0, 32], sizes = [16, 32], strides = [1, 1]} : vector<16x96xf32> to vector<16x32xf32>
    %142 = vector.extract_strided_slice %132 {offsets = [0, 32], sizes = [16, 32], strides = [1, 1]} : vector<16x96xf32> to vector<16x32xf32>
    %143 = arith.addf %141, %142 : vector<16x32xf32>
    %144 = arith.negf %143 : vector<16x32xf32>
    %145 = math.exp %144 : vector<16x32xf32>
    %cst_62 = arith.constant 1.000000e+00 : f32
    %146 = vector.broadcast %cst_62 : f32 to vector<16x32xf32>
    %147 = arith.addf %146, %145 : vector<16x32xf32>
    %148 = arith.divf %146, %147 : vector<16x32xf32>
    %149 = vector.extract_strided_slice %128 {offsets = [0, 64], sizes = [16, 32], strides = [1, 1]} : vector<16x96xf32> to vector<16x32xf32>
    %150 = vector.extract_strided_slice %132 {offsets = [0, 64], sizes = [16, 32], strides = [1, 1]} : vector<16x96xf32> to vector<16x32xf32>
    %151 = arith.mulf %140, %150 : vector<16x32xf32>
    %152 = arith.addf %149, %151 : vector<16x32xf32>
    %153 = math.tanh %152 : vector<16x32xf32>
    %cst_63 = arith.constant 1.000000e+00 : f32
    %154 = vector.broadcast %cst_63 : f32 to vector<16x32xf32>
    %155 = arith.subf %154, %148 : vector<16x32xf32>
    %156 = arith.mulf %155, %153 : vector<16x32xf32>
    %157 = arith.mulf %148, %21 : vector<16x32xf32>
    %158 = arith.addf %156, %157 : vector<16x32xf32>
    %c0_64 = arith.constant 0 : index
    %c0_65 = arith.constant 0 : index
    %159 = vector.load %arg6[%c0_64, %c0_65] : memref<16x32xf32, #tpu.memory_space<vmem>>, vector<16x32xf32>
    tpu.vector_store %arg6[%c0_64, %c0_65], %158 {strides = array<i32>} : memref<16x32xf32, #tpu.memory_space<vmem>>, vector<16x32xf32>,
    %160 = arith.truncf %119 : vector<16x32xf32> to vector<16x32xbf16>
    %cst_66 = arith.constant dense<0.000000e+00> : vector<16x6xf32>
    %161 = tpu.matmul %160, %7, %cst_66 {dimension_numbers = #tpu.dot_dimension_numbers<[1], [0], [0], [1], [0, 0, 1, 1], [], []>} : vector<16x32xbf16>, vector<32x6xbf16>, vector<16x6xf32> -> vector<16x6xf32>
    %162 = arith.truncf %158 : vector<16x32xf32> to vector<16x32xbf16>
    %cst_67 = arith.constant dense<0.000000e+00> : vector<16x6xf32>
    %163 = tpu.matmul %162, %8, %cst_67 {dimension_numbers = #tpu.dot_dimension_numbers<[1], [0], [0], [1], [0, 0, 1, 1], [], []>} : vector<16x32xbf16>, vector<32x6xbf16>, vector<16x6xf32> -> vector<16x6xf32>
    %164 = arith.addf %161, %163 : vector<16x6xf32>
    %165 = vector.broadcast %16 : vector<1x6xf32> to vector<16x6xf32>
    %166 = arith.addf %164, %165 : vector<16x6xf32>
    %cst_68 = arith.constant 0.166666672 : f32
    %167 = vector.broadcast %cst_68 : f32 to vector<1x6xf32>
    %cst_69 = arith.constant dense<0.000000e+00> : vector<1x16xf32>
    %168 = tpu.matmul %167, %166, %cst_69 {dimension_numbers = #tpu.dot_dimension_numbers<[1], [1], [0], [0], [0, 0, 1, 0], [], []>} : vector<1x6xf32>, vector<16x6xf32>, vector<1x16xf32> -> vector<1x16xf32>
    %169 = vector.extract_strided_slice %166 {offsets = [0, 0], sizes = [1, 6], strides = [1, 1]} : vector<16x6xf32> to vector<1x6xf32>
    %c0_70 = arith.constant 0 : index
    %c0_71 = arith.constant 0 : index
    %170 = vector.load %arg5[%c0_70, %c0_71] : memref<2x13xf32, #tpu.memory_space<vmem>>, vector<1x6xf32>
    tpu.vector_store %arg5[%c0_70, %c0_71], %169 {strides = array<i32>} : memref<2x13xf32, #tpu.memory_space<vmem>>, vector<1x6xf32>,
    %171 = vector.extract_strided_slice %168 {offsets = [0, 1], sizes = [1, 3], strides = [1, 1]} : vector<1x16xf32> to vector<1x3xf32>
    %c0_72 = arith.constant 0 : index
    %c6_73 = arith.constant 6 : index
    %172 = vector.load %arg5[%c0_72, %c6_73] : memref<2x13xf32, #tpu.memory_space<vmem>>, vector<1x3xf32>
    tpu.vector_store %arg5[%c0_72, %c6_73], %171 {strides = array<i32>} : memref<2x13xf32, #tpu.memory_space<vmem>>, vector<1x3xf32>,
    %173 = vector.extract_strided_slice %168 {offsets = [0, 4], sizes = [1, 4], strides = [1, 1]} : vector<1x16xf32> to vector<1x4xf32>
    %c0_74 = arith.constant 0 : index
    %c9 = arith.constant 9 : index
    %174 = vector.load %arg5[%c0_74, %c9] : memref<2x13xf32, #tpu.memory_space<vmem>>, vector<1x4xf32>
    tpu.vector_store %arg5[%c0_74, %c9], %173 {strides = array<i32>} : memref<2x13xf32, #tpu.memory_space<vmem>>, vector<1x4xf32>,
    %175 = vector.extract_strided_slice %166 {offsets = [8, 0], sizes = [1, 6], strides = [1, 1]} : vector<16x6xf32> to vector<1x6xf32>
    %c1_75 = arith.constant 1 : index
    %c0_76 = arith.constant 0 : index
    %176 = vector.load %arg5[%c1_75, %c0_76] : memref<2x13xf32, #tpu.memory_space<vmem>>, vector<1x6xf32>
    tpu.vector_store %arg5[%c1_75, %c0_76], %175 {strides = array<i32>} : memref<2x13xf32, #tpu.memory_space<vmem>>, vector<1x6xf32>,
    %177 = vector.extract_strided_slice %168 {offsets = [0, 9], sizes = [1, 3], strides = [1, 1]} : vector<1x16xf32> to vector<1x3xf32>
    %c1_77 = arith.constant 1 : index
    %c6_78 = arith.constant 6 : index
    %178 = vector.load %arg5[%c1_77, %c6_78] : memref<2x13xf32, #tpu.memory_space<vmem>>, vector<1x3xf32>
    tpu.vector_store %arg5[%c1_77, %c6_78], %177 {strides = array<i32>} : memref<2x13xf32, #tpu.memory_space<vmem>>, vector<1x3xf32>,
    %179 = vector.extract_strided_slice %168 {offsets = [0, 12], sizes = [1, 4], strides = [1, 1]} : vector<1x16xf32> to vector<1x4xf32>
    %c1_79 = arith.constant 1 : index
    %c9_80 = arith.constant 9 : index
    %180 = vector.load %arg5[%c1_79, %c9_80] : memref<2x13xf32, #tpu.memory_space<vmem>>, vector<1x4xf32>
    tpu.vector_store %arg5[%c1_79, %c9_80], %179 {strides = array<i32>} : memref<2x13xf32, #tpu.memory_space<vmem>>, vector<1x4xf32>,
    return
  }
}

</mosaic_0001>

<llo_original>
// kernel: eq.8
$region0: #{eq.8}
  %s0 = inlined_call_operand.vmem [shape: s32[2,8], index: 0, kind: input, shape index: {}]
  %s1 = inlined_call_operand.vmem [shape: s32[16], index: 1, kind: output, shape index: {}]
  $region1: #{eq.8} parent=0
    #allocation0 [shape = 'u8[4096]{0}', space=vmem, size = 0x1000, scoped, tag = 'scoped mem for output reshape']
    #allocation1 [shape = 'u8[4096]{0}', space=vmem, size = 0x1000, scoped, tag = 'scoped mem for input reshape']
    %s3 = sshllo.u32 0, 2
    %v4 = vld [vmem:[%s0] sm:%s3]
    %5 = vst [vmem:[#allocation1] sm:%s3] %v4
    %v6 = vld [vmem:[#allocation1] sm:$0x1]
    %vm7 = vcmask 64512
    %8 = vst.msk [vmem:[#allocation0] sm:$0x1] %vm7, %v6
    %s9 = scalar_lea.vmem [#allocation1], 1
    %v10 = vld [vmem:[%s9] sm:$0x1]
    %11 = vrot.lane.b32.xlu0 %v10, 8
    %v12 = vpop.permute.xlu0 %11
    %vm13 = vcmask 130112
    %14 = vst.msk [vmem:[#allocation0] sm:$0x1] %vm13, %v12
    %s16 = sshllo.u32 0, 1
    %v18 = vld [vmem:[#allocation0] sm:%s16]
    %s19 = sshllo.u32 0, 1
    %20 = vst [vmem:[%s1] sm:%s19] %v18

// kernel: token_wise_branch_attn_forward.1
$region0: #{token_wise_branch_attn_forward.1}
  #allocation0 [shape = 'u32[]', space=smem, size = 0x4, offset = 0x4, fixed_abs, tag = 'smem constant byte address 0x4 - core index']
  #allocation1 [shape = 'u32[144,128]{1,0:T(1,128)}', space=vmem, size = 0x12000, scoped, tag = 'internal scratch']
  #allocation2 [shape = 'f32[16,32]{1,0:T(8,128)}', space=vmem, size = 0x2000, scoped, tag = 'scratch operand']
  %s0 = inlined_call_operand.vmem [shape: f32[16,16], index: 0, kind: input, shape index: {}]
  %s1 = inlined_call_operand.vmem [shape: f32[16,16], index: 1, kind: input, shape index: {}]
  %s2 = inlined_call_operand.vmem [shape: f32[16,32], index: 2, kind: input, shape index: {}]
  %s3 = inlined_call_operand.hbm [shape: bf16[272,96], index: 3, kind: input, shape index: {}]
  %s4 = inlined_call_operand.vmem [shape: f32[8,96], index: 4, kind: input, shape index: {}]
  %s5 = inlined_call_operand.hbm [shape: f32[2,13], index: 5, kind: output, shape index: {0}]
  %s6 = inlined_call_operand.hbm [shape: f32[16,32], index: 6, kind: output, shape index: {1}]
  %7 = xla_tuple %s5, %s6
  %s8 = sld [smem:[#allocation0]]
  $region42: #{token_wise_branch_attn_forward.1} parent=0
    _
  %s10 = ssub.s32 1, %s8
  %s11 = scalar_select 0, %s10, %s8
  $region1: #{token_wise_branch_attn_forward.1} parent=0
    #allocation3 [shape = 'u8[69632]{0}', space=vmem, size = 0x11000, scoped, tag = 'input window, operand 3, single buffered']
    #allocation4 [shape = 's32[1]{0}', space=sflag, size = 0x4, scoped, tag = 'scoped memory for token_wise_branch_attn_forward.1']
    #allocation5 [shape = 's32[1]{0}', space=sflag, size = 0x4, scoped, tag = 'scoped memory for token_wise_branch_attn_forward.1']
    #allocation6 [shape = 'u8[1024]{0}', space=vmem, size = 0x400, scoped, tag = 'output window, operand 0, single buffered']
    #allocation7 [shape = 'u8[8192]{0}', space=vmem, size = 0x2000, scoped, tag = 'output window, operand 1, single buffered']
    #allocation8 [shape = 's32[1]{0}', space=sflag, size = 0x4, scoped, tag = 'scoped memory for token_wise_branch_attn_forward.1']
    %12 = vsyncpa [#allocation4], 0
    %13 = vsyncpa [#allocation5], 0
    %14 = vsyncpa [#allocation8], 0
    // Predicated region
    $region2: #{token_wise_branch_attn_forward.1} parent=1 // pred_check
      _
    $region3: #{token_wise_branch_attn_forward.1} parent=1 // pred_check_branch
      %16 = sbr.rel (0) target = $region5
    $region4: #{token_wise_branch_attn_forward.1} parent=1 // pred_region
      _
    $region5: #{token_wise_branch_attn_forward.1} parent=1 // pred_fallthru
      _
    // Predicated region
    $region6: #{token_wise_branch_attn_forward.1} parent=1 // pred_check
      _
    $region7: #{token_wise_branch_attn_forward.1} parent=1 // pred_check_branch
      %18 = sbr.rel (0) target = $region9
    $region8: #{token_wise_branch_attn_forward.1} parent=1 // pred_region
      _
    $region9: #{token_wise_branch_attn_forward.1} parent=1 // pred_fallthru
      _
    // Predicated region
    $region10: #{token_wise_branch_attn_forward.1} parent=1 // pred_check
      _
    $region11: #{token_wise_branch_attn_forward.1} parent=1 // pred_check_branch
      %20 = sbr.rel (0) target = $region13
    $region12: #{token_wise_branch_attn_forward.1} parent=1 // pred_region
      _
    $region13: #{token_wise_branch_attn_forward.1} parent=1 // pred_fallthru
      _
    // Predicated region
    $region14: #{token_wise_branch_attn_forward.1} parent=1 // pred_check
      _
    $region15: #{token_wise_branch_attn_forward.1} parent=1 // pred_check_branch
      %22 = sbr.rel (0) target = $region17
    $region16: #{token_wise_branch_attn_forward.1} parent=1 // pred_region
      %s24 = ssub.s32 2176, 2176
      %25 = vsyncadd [#allocation4], %s24
      %s26 = sshll.u32 [#allocation3], 4
      %s27 = int_to_ptr.vmem [resolvable:$true] %s26
      %32 = dma.hbm_to_vmem [thread:$0]  %s3, 2176, %s27, [#allocation4], 64, 64, 4
    $region17: #{token_wise_branch_attn_forward.1} parent=1 // pred_fallthru
      _
    // Predicated region
    $region18: #{token_wise_branch_attn_forward.1} parent=1 // pred_check
      _
    $region19: #{token_wise_branch_attn_forward.1} parent=1 // pred_check_branch
      %34 = sbr.rel (0) target = $region21
    $region20: #{token_wise_branch_attn_forward.1} parent=1 // pred_region
      _
    $region21: #{token_wise_branch_attn_forward.1} parent=1 // pred_fallthru
      _
    // Predicated region
    $region22: #{token_wise_branch_attn_forward.1} parent=1 // pred_check
      _
    $region23: #{token_wise_branch_attn_forward.1} parent=1 // pred_check_branch
      %36 = sbr.rel (0) target = $region25
    $region24: #{token_wise_branch_attn_forward.1} parent=1 // pred_region
      %37 = dma.done [#allocation4], 2176
    $region25: #{token_wise_branch_attn_forward.1} parent=1 // pred_fallthru
      _
    %v39 = vld [vmem:[#allocation3] sm:$0xf]
    %v40 = vld [vmem:[#allocation3 + $0x4] sm:$0xf]
    %v41 = vld [vmem:[#allocation3 + $0x8] sm:$0xf]
    %v42 = vld [vmem:[#allocation3 + $0xc] sm:$0xf]
    %v43 = vld [vmem:[#allocation3 + $0x10] sm:$0xf]
    %v44 = vld [vmem:[#allocation3 + $0x14] sm:$0xf]
    %v45 = vld [vmem:[#allocation3 + $0x18] sm:$0xf]
    %v46 = vld [vmem:[#allocation3 + $0x1c] sm:$0xf]
    %v47 = vld [vmem:[#allocation3 + $0x20] sm:$0xf]
    %v48 = vld [vmem:[#allocation3 + $0x24] sm:$0xf]
    %v49 = vld [vmem:[#allocation3 + $0x28] sm:$0xf]
    %v50 = vld [vmem:[#allocation3 + $0x2c] sm:$0xf]
    %v51 = vld [vmem:[#allocation3 + $0x30] sm:$0xf]
    %v52 = vld [vmem:[#allocation3 + $0x34] sm:$0xf]
    %v53 = vld [vmem:[#allocation3 + $0x38] sm:$0xf]
    %v54 = vld [vmem:[#allocation3 + $0x3c] sm:$0xf]
    %v55 = vld [vmem:[#allocation3 + $0x40] sm:$0xf]
    %v56 = vld [vmem:[#allocation3 + $0x44] sm:$0xf]
    %v57 = vld [vmem:[#allocation3 + $0x48] sm:$0xf]
    %v58 = vld [vmem:[#allocation3 + $0x4c] sm:$0xf]
    %v59 = vld [vmem:[#allocation3 + $0x50] sm:$0xf]
    %v60 = vld [vmem:[#allocation3 + $0x54] sm:$0xf]
    %v61 = vld [vmem:[#allocation3 + $0x58] sm:$0xf]
    %v62 = vld [vmem:[#allocation3 + $0x5c] sm:$0xf]
    %v63 = vld [vmem:[#allocation3 + $0x60] sm:$0xf]
    %v64 = vld [vmem:[#allocation3 + $0x64] sm:$0xf]
    %v65 = vld [vmem:[#allocation3 + $0x68] sm:$0xf]
    %v66 = vld [vmem:[#allocation3 + $0x6c] sm:$0xf]
    %v67 = vld [vmem:[#allocation3 + $0x70] sm:$0xf]
    %v68 = vld [vmem:[#allocation3 + $0x74] sm:$0xf]
    %v69 = vld [vmem:[#allocation3 + $0x78] sm:$0xf]
    %v70 = vld [vmem:[#allocation3 + $0x7c] sm:$0xf]
    %v71 = vld [vmem:[#allocation3 + $0x80] sm:$0xf]
    %v72 = vld [vmem:[#allocation3 + $0x84] sm:$0xf]
    %v73 = vld [vmem:[%s4] sm:$0x1]
    %v74 = vld [vmem:[%s4 + $0x1] sm:$0x1]
    %v75 = vld [vmem:[%s4 + $0x2] sm:$0x1]
    %v76 = vld [vmem:[%s4 + $0x3] sm:$0x1]
    %v77 = vld [vmem:[%s4 + $0x4] sm:$0x1]
    %v78 = vld [vmem:[%s4 + $0x5] sm:$0x1]
    %v79 = vld [vmem:[%s4 + $0x6] sm:$0x1]
    %v80 = vld [vmem:[%s4 + $0x7] sm:$0x1]
    %v81 = vld [vmem:[%s0] sm:$0xff]
    %v82 = vld [vmem:[%s0 + $0x8] sm:$0xff]
    %v83 = vld [vmem:[%s1] sm:$0xff]
    %v84 = vld [vmem:[%s1 + $0x8] sm:$0xff]
    %vm85 = vcmp.gt.f32.partialorder %v83, 0.0
    %vm86 = vcmp.gt.f32.partialorder %v84, 0.0
    %v87 = vld [vmem:[%s2] sm:$0xff]
    %v88 = vld [vmem:[%s2 + $0x8] sm:$0xff]
    %v89 = vpack.c.bf16 %v82, %v81
    %v90 = vlaneseq
    %v91 = vshrl.u32 %v90, 7
    %v92 = vsub.s32 0, %v91
    %v93 = vrot.slane %v73, %v92
    %v96 = vunpack.c.l.b16 %v51
    %v97 = vunpack.c.l.b16 %v52
    %v98 = vpack.c.b16 %v97, %v96
    %vm100 = vcmask 130048
    %v102 = vsel %vm100, %v89, 0
    %104 = vmatprep.subr.bf16.mxu0 0
    %105 = vmatpush1.bf16.msra.mxu0 %v98
    %106 = vmatprep.subr.bf16.mxu0 0
    %107 = vmatpush1.bf16.msra.mxu0 0
    %108 = vmatprep.subr.bf16.mxu0 0
    %109 = vmatpush1.bf16.msra.mxu0 0
    %110 = vmatprep.subr.bf16.mxu0 0
    %111 = vmatpush1.bf16.msra.mxu0 0
    %112 = vmatprep.subr.bf16.mxu0 0
    %113 = vmatpush1.bf16.msra.mxu0 0
    %114 = vmatprep.subr.bf16.mxu0 0
    %115 = vmatpush1.bf16.msra.mxu0 0
    %116 = vmatprep.subr.bf16.mxu0 0
    %117 = vmatpush1.bf16.msra.mxu0 0
    %118 = vmatprep.subr.bf16.mxu0 0
    %119 = vmatpush1.bf16.msra.mxu0 0
    %120 = vmatprep.subr.bf16.mxu0 0
    %121 = vmatpush1.bf16.msra.mxu0 0
    %122 = vmatprep.subr.bf16.mxu0 0
    %123 = vmatpush1.bf16.msra.mxu0 0
    %124 = vmatprep.subr.bf16.mxu0 0
    %125 = vmatpush1.bf16.msra.mxu0 0
    %126 = vmatprep.subr.bf16.mxu0 0
    %127 = vmatpush1.bf16.msra.mxu0 0
    %128 = vmatprep.subr.bf16.mxu0 0
    %129 = vmatpush1.bf16.msra.mxu0 0
    %130 = vmatprep.subr.bf16.mxu0 0
    %131 = vmatpush1.bf16.msra.mxu0 0
    %132 = vmatprep.subr.bf16.mxu0 0
    %133 = vmatpush1.bf16.msra.mxu0 0
    %134 = vmatprep.subr.bf16.mxu0 0
    %135 = vmatpush1.bf16.msra.mxu0 0
    %136 = vmatprep.mubr.bf16.mxu0 0
    %137 = vmatmul.mubr.bf16.gmra.mrb[0].mxu0 %v102
    %v138 = vpop.f32.mrb[0].mxu0
    %v139 = vadd.f32 %v93, %v138
    %v140 = vpop.f32.mrb[0].mxu0
    %v141 = vpop.f32.mrb[0].mxu0
    %v142 = vadd.f32 %v93, %v141
    %v143 = vpop.f32.mrb[0].mxu0
    %144 = vdwg.mxu0
    %v145 = vmax.f32 %v139, 0.0
    %v146 = vmax.f32 %v142, 0.0
    %v147 = vpack.c.bf16 %v146, %v145
    %v148 = vlaneseq
    %v149 = vshrl.u32 %v148, 7
    %v150 = vsub.s32 0, %v149
    %v151 = vrot.slane %v74, %v150
    %v156 = vunpack.c.l.b16 %v39
    %v157 = vunpack.c.l.b16 %v40
    %v158 = vunpack.c.l.b16 %v41
    %v159 = vunpack.c.l.b16 %v42
    %v160 = vpack.c.b16 %v157, %v156
    %v161 = vpack.c.b16 %v159, %v158
    %vm164 = vcmask 261120
    %v166 = vsel %vm164, %v147, 0
    %168 = vmatprep.subr.bf16.mxu0 0
    %169 = vmatpush1.bf16.msra.mxu0 %v160
    %170 = vmatprep.subr.bf16.mxu0 0
    %171 = vmatpush1.bf16.msra.mxu0 %v161
    %172 = vmatprep.subr.bf16.mxu0 0
    %173 = vmatpush1.bf16.msra.mxu0 0
    %174 = vmatprep.subr.bf16.mxu0 0
    %175 = vmatpush1.bf16.msra.mxu0 0
    %176 = vmatprep.subr.bf16.mxu0 0
    %177 = vmatpush1.bf16.msra.mxu0 0
    %178 = vmatprep.subr.bf16.mxu0 0
    %179 = vmatpush1.bf16.msra.mxu0 0
    %180 = vmatprep.subr.bf16.mxu0 0
    %181 = vmatpush1.bf16.msra.mxu0 0
    %182 = vmatprep.subr.bf16.mxu0 0
    %183 = vmatpush1.bf16.msra.mxu0 0
    %184 = vmatprep.subr.bf16.mxu0 0
    %185 = vmatpush1.bf16.msra.mxu0 0
    %186 = vmatprep.subr.bf16.mxu0 0
    %187 = vmatpush1.bf16.msra.mxu0 0
    %188 = vmatprep.subr.bf16.mxu0 0
    %189 = vmatpush1.bf16.msra.mxu0 0
    %190 = vmatprep.subr.bf16.mxu0 0
    %191 = vmatpush1.bf16.msra.mxu0 0
    %192 = vmatprep.subr.bf16.mxu0 0
    %193 = vmatpush1.bf16.msra.mxu0 0
    %194 = vmatprep.subr.bf16.mxu0 0
    %195 = vmatpush1.bf16.msra.mxu0 0
    %196 = vmatprep.subr.bf16.mxu0 0
    %197 = vmatpush1.bf16.msra.mxu0 0
    %198 = vmatprep.subr.bf16.mxu0 0
    %199 = vmatpush1.bf16.msra.mxu0 0
    %200 = vmatprep.mubr.bf16.mxu0 0
    %201 = vmatmul.mubr.bf16.gmra.mrb[0].mxu0 %v166
    %v202 = vpop.f32.mrb[0].mxu0
    %v203 = vadd.f32 %v151, %v202
    %v204 = vpop.f32.mrb[0].mxu0
    %v205 = vpop.f32.mrb[0].mxu0
    %v206 = vadd.f32 %v151, %v205
    %v207 = vpop.f32.mrb[0].mxu0
    %208 = vdwg.mxu0
    %v209 = vpack.c.bf16 %v206, %v203
    %211 = vrot.lane.b32.xlu0 %v209, 96
    %v212 = vpop.permute.xlu0 %211
    %vm213 = vcmask 64512
    %v215 = vsel %vm213, %v209, 0
    %v218 = vsel %vm213, %v212, 0
    %220 = vmatprep.subr.bf16.mxu0 0
    %221 = vmatpush1.bf16.xpose.msra.mxu0 %v218
    %222 = vmatprep.subr.bf16.mxu0 0
    %223 = vmatpush1.bf16.xpose.msra.mxu0 0
    %224 = vmatprep.subr.bf16.mxu0 0
    %225 = vmatpush1.bf16.xpose.msra.mxu0 0
    %226 = vmatprep.subr.bf16.mxu0 0
    %227 = vmatpush1.bf16.xpose.msra.mxu0 0
    %228 = vmatprep.subr.bf16.mxu0 0
    %229 = vmatpush1.bf16.xpose.msra.mxu0 0
    %230 = vmatprep.subr.bf16.mxu0 0
    %231 = vmatpush1.bf16.xpose.msra.mxu0 0
    %232 = vmatprep.subr.bf16.mxu0 0
    %233 = vmatpush1.bf16.xpose.msra.mxu0 0
    %234 = vmatprep.subr.bf16.mxu0 0
    %235 = vmatpush1.bf16.xpose.msra.mxu0 0
    %236 = vmatprep.subr.bf16.mxu0 0
    %237 = vmatpush1.bf16.xpose.msra.mxu0 0
    %238 = vmatprep.subr.bf16.mxu0 0
    %239 = vmatpush1.bf16.xpose.msra.mxu0 0
    %240 = vmatprep.subr.bf16.mxu0 0
    %241 = vmatpush1.bf16.xpose.msra.mxu0 0
    %242 = vmatprep.subr.bf16.mxu0 0
    %243 = vmatpush1.bf16.xpose.msra.mxu0 0
    %244 = vmatprep.subr.bf16.mxu0 0
    %245 = vmatpush1.bf16.xpose.msra.mxu0 0
    %246 = vmatprep.subr.bf16.mxu0 0
    %247 = vmatpush1.bf16.xpose.msra.mxu0 0
    %248 = vmatprep.subr.bf16.mxu0 0
    %249 = vmatpush1.bf16.xpose.msra.mxu0 0
    %250 = vmatprep.subr.bf16.mxu0 0
    %251 = vmatpush1.bf16.xpose.msra.mxu0 0
    %252 = vmatprep.mubr.bf16.mxu0 0
    %253 = vmatmul.mubr.bf16.gmra.mrb[0].mxu0 %v215
    %v254 = vpop.f32.mrb[0].mxu0
    %v255 = vadd.f32 0.0, %v254
    %v256 = vpop.f32.mrb[0].mxu0
    %v257 = vpop.f32.mrb[0].mxu0
    %v258 = vadd.f32 0.0, %v257
    %v259 = vpop.f32.mrb[0].mxu0
    %260 = vdwg.mxu0
    %v261 = vsel %vm85, %v255, -1e+09
    %v262 = vsel %vm86, %v258, -1e+09
    %v263 = vsel %vm100, %v261, -inf
    %264 = vmax.xlane.f32.xlu0 %v263
    %v265 = vpop.xlane.xlu0 %264
    %v266 = vsel %vm100, %v262, -inf
    %267 = vmax.xlane.f32.xlu0 %v266
    %v268 = vpop.xlane.xlu0 %267
    %v269 = vsub.f32 %v261, %v265
    %v270 = vsub.f32 %v262, %v268
    %v271 = vmul.f32 %v269, 1.442695
    %v272 = vpow.pop %v271
    %v273 = vmul.f32 %v270, 1.442695
    %v274 = vpow.pop %v273
    %v275 = vsel %vm100, %v272, 0.0
    %276 = vadd.xlane.f32.xlu0 %v275
    %v277 = vpop.xlane.xlu0 %276
    %v278 = vsel %vm100, %v274, 0.0
    %279 = vadd.xlane.f32.xlu0 %v278
    %v280 = vpop.xlane.xlu0 %279
    %v281 = vrcp.pop %v277
    %v282 = vrcp.pop %v280
    %v283 = vmul.f32 %v272, %v281
    %v284 = vmul.f32 %v274, %v282
    %v285 = vpack.c.bf16 %v284, %v283
    %286 = vrot.lane.b32.xlu0 %v209, 64
    %v287 = vpop.permute.xlu0 %286
    %v290 = vsel %vm100, %v285, 0
    %292 = vmatprep.subr.bf16.mxu0 0
    %293 = vmatpush1.bf16.msra.mxu0 %v287
    %294 = vmatprep.subr.bf16.mxu0 0
    %295 = vmatpush1.bf16.msra.mxu0 0
    %296 = vmatprep.subr.bf16.mxu0 0
    %297 = vmatpush1.bf16.msra.mxu0 0
    %298 = vmatprep.subr.bf16.mxu0 0
    %299 = vmatpush1.bf16.msra.mxu0 0
    %300 = vmatprep.subr.bf16.mxu0 0
    %301 = vmatpush1.bf16.msra.mxu0 0
    %302 = vmatprep.subr.bf16.mxu0 0
    %303 = vmatpush1.bf16.msra.mxu0 0
    %304 = vmatprep.subr.bf16.mxu0 0
    %305 = vmatpush1.bf16.msra.mxu0 0
    %306 = vmatprep.subr.bf16.mxu0 0
    %307 = vmatpush1.bf16.msra.mxu0 0
    %308 = vmatprep.subr.bf16.mxu0 0
    %309 = vmatpush1.bf16.msra.mxu0 0
    %310 = vmatprep.subr.bf16.mxu0 0
    %311 = vmatpush1.bf16.msra.mxu0 0
    %312 = vmatprep.subr.bf16.mxu0 0
    %313 = vmatpush1.bf16.msra.mxu0 0
    %314 = vmatprep.subr.bf16.mxu0 0
    %315 = vmatpush1.bf16.msra.mxu0 0
    %316 = vmatprep.subr.bf16.mxu0 0
    %317 = vmatpush1.bf16.msra.mxu0 0
    %318 = vmatprep.subr.bf16.mxu0 0
    %319 = vmatpush1.bf16.msra.mxu0 0
    %320 = vmatprep.subr.bf16.mxu0 0
    %321 = vmatpush1.bf16.msra.mxu0 0
    %322 = vmatprep.subr.bf16.mxu0 0
    %323 = vmatpush1.bf16.msra.mxu0 0
    %324 = vmatprep.mubr.bf16.mxu0 0
    %325 = vmatmul.mubr.bf16.gmra.mrb[0].mxu0 %v290
    %v326 = vpop.f32.mrb[0].mxu0
    %v327 = vadd.f32 0.0, %v326
    %v328 = vpop.f32.mrb[0].mxu0
    %v329 = vpop.f32.mrb[0].mxu0
    %v330 = vadd.f32 0.0, %v329
    %v331 = vpop.f32.mrb[0].mxu0
    %332 = vdwg.mxu0
    %333 = vst.msk [vmem:[#allocation2] sm:$0xff] %vm213, %v327
    %334 = vst.msk [vmem:[#allocation2 + $0x8] sm:$0xff] %vm213, %v330
    %335 = vrot.lane.b32.xlu0 %v209, 120
    %v336 = vpop.permute.xlu0 %335
    %337 = vrot.lane.b32.xlu0 %v209, 88
    %v338 = vpop.permute.xlu0 %337
    %v340 = vsel %vm213, %v336, 0
    %v343 = vsel %vm213, %v338, 0
    %345 = vmatprep.subr.bf16.mxu0 0
    %346 = vmatpush1.bf16.xpose.msra.mxu0 %v343
    %347 = vmatprep.subr.bf16.mxu0 0
    %348 = vmatpush1.bf16.xpose.msra.mxu0 0
    %349 = vmatprep.subr.bf16.mxu0 0
    %350 = vmatpush1.bf16.xpose.msra.mxu0 0
    %351 = vmatprep.subr.bf16.mxu0 0
    %352 = vmatpush1.bf16.xpose.msra.mxu0 0
    %353 = vmatprep.subr.bf16.mxu0 0
    %354 = vmatpush1.bf16.xpose.msra.mxu0 0
    %355 = vmatprep.subr.bf16.mxu0 0
    %356 = vmatpush1.bf16.xpose.msra.mxu0 0
    %357 = vmatprep.subr.bf16.mxu0 0
    %358 = vmatpush1.bf16.xpose.msra.mxu0 0
    %359 = vmatprep.subr.bf16.mxu0 0
    %360 = vmatpush1.bf16.xpose.msra.mxu0 0
    %361 = vmatprep.subr.bf16.mxu0 0
    %362 = vmatpush1.bf16.xpose.msra.mxu0 0
    %363 = vmatprep.subr.bf16.mxu0 0
    %364 = vmatpush1.bf16.xpose.msra.mxu0 0
    %365 = vmatprep.subr.bf16.mxu0 0
    %366 = vmatpush1.bf16.xpose.msra.mxu0 0
    %367 = vmatprep.subr.bf16.mxu0 0
    %368 = vmatpush1.bf16.xpose.msra.mxu0 0
    %369 = vmatprep.subr.bf16.mxu0 0
    %370 = vmatpush1.bf16.xpose.msra.mxu0 0
    %371 = vmatprep.subr.bf16.mxu0 0
    %372 = vmatpush1.bf16.xpose.msra.mxu0 0
    %373 = vmatprep.subr.bf16.mxu0 0
    %374 = vmatpush1.bf16.xpose.msra.mxu0 0
    %375 = vmatprep.subr.bf16.mxu0 0
    %376 = vmatpush1.bf16.xpose.msra.mxu0 0
    %377 = vmatprep.mubr.bf16.mxu0 0
    %378 = vmatmul.mubr.bf16.gmra.mrb[0].mxu0 %v340
    %v379 = vpop.f32.mrb[0].mxu0
    %v380 = vadd.f32 0.0, %v379
    %v381 = vpop.f32.mrb[0].mxu0
    %v382 = vpop.f32.mrb[0].mxu0
    %v383 = vadd.f32 0.0, %v382
    %v384 = vpop.f32.mrb[0].mxu0
    %385 = vdwg.mxu0
    %v386 = vsel %vm85, %v380, -1e+09
    %v387 = vsel %vm86, %v383, -1e+09
    %v388 = vsel %vm100, %v386, -inf
    %389 = vmax.xlane.f32.xlu0 %v388
    %v390 = vpop.xlane.xlu0 %389
    %v391 = vsel %vm100, %v387, -inf
    %392 = vmax.xlane.f32.xlu0 %v391
    %v393 = vpop.xlane.xlu0 %392
    %v394 = vsub.f32 %v386, %v390
    %v395 = vsub.f32 %v387, %v393
    %v396 = vmul.f32 %v394, 1.442695
    %v397 = vpow.pop %v396
    %v398 = vmul.f32 %v395, 1.442695
    %v399 = vpow.pop %v398
    %v400 = vsel %vm100, %v397, 0.0
    %401 = vadd.xlane.f32.xlu0 %v400
    %v402 = vpop.xlane.xlu0 %401
    %v403 = vsel %vm100, %v399, 0.0
    %404 = vadd.xlane.f32.xlu0 %v403
    %v405 = vpop.xlane.xlu0 %404
    %v406 = vrcp.pop %v402
    %v407 = vrcp.pop %v405
    %v408 = vmul.f32 %v397, %v406
    %v409 = vmul.f32 %v399, %v407
    %v410 = vpack.c.bf16 %v409, %v408
    %411 = vrot.lane.b32.xlu0 %v209, 56
    %v412 = vpop.permute.xlu0 %411
    %v415 = vsel %vm100, %v410, 0
    %417 = vmatprep.subr.bf16.mxu0 0
    %418 = vmatpush1.bf16.msra.mxu0 %v412
    %419 = vmatprep.subr.bf16.mxu0 0
    %420 = vmatpush1.bf16.msra.mxu0 0
    %421 = vmatprep.subr.bf16.mxu0 0
    %422 = vmatpush1.bf16.msra.mxu0 0
    %423 = vmatprep.subr.bf16.mxu0 0
    %424 = vmatpush1.bf16.msra.mxu0 0
    %425 = vmatprep.subr.bf16.mxu0 0
    %426 = vmatpush1.bf16.msra.mxu0 0
    %427 = vmatprep.subr.bf16.mxu0 0
    %428 = vmatpush1.bf16.msra.mxu0 0
    %429 = vmatprep.subr.bf16.mxu0 0
    %430 = vmatpush1.bf16.msra.mxu0 0
    %431 = vmatprep.subr.bf16.mxu0 0
    %432 = vmatpush1.bf16.msra.mxu0 0
    %433 = vmatprep.subr.bf16.mxu0 0
    %434 = vmatpush1.bf16.msra.mxu0 0
    %435 = vmatprep.subr.bf16.mxu0 0
    %436 = vmatpush1.bf16.msra.mxu0 0
    %437 = vmatprep.subr.bf16.mxu0 0
    %438 = vmatpush1.bf16.msra.mxu0 0
    %439 = vmatprep.subr.bf16.mxu0 0
    %440 = vmatpush1.bf16.msra.mxu0 0
    %441 = vmatprep.subr.bf16.mxu0 0
    %442 = vmatpush1.bf16.msra.mxu0 0
    %443 = vmatprep.subr.bf16.mxu0 0
    %444 = vmatpush1.bf16.msra.mxu0 0
    %445 = vmatprep.subr.bf16.mxu0 0
    %446 = vmatpush1.bf16.msra.mxu0 0
    %447 = vmatprep.subr.bf16.mxu0 0
    %448 = vmatpush1.bf16.msra.mxu0 0
    %449 = vmatprep.mubr.bf16.mxu0 0
    %450 = vmatmul.mubr.bf16.gmra.mrb[0].mxu0 %v415
    %v451 = vpop.f32.mrb[0].mxu0
    %v452 = vadd.f32 0.0, %v451
    %v453 = vpop.f32.mrb[0].mxu0
    %v454 = vpop.f32.mrb[0].mxu0
    %v455 = vadd.f32 0.0, %v454
    %v456 = vpop.f32.mrb[0].mxu0
    %457 = vdwg.mxu0
    %460 = vrot.lane.b32.xlu0 %v452, 8
    %v461 = vpop.permute.xlu0 %460
    %462 = vrot.lane.b32.xlu0 %v455, 8
    %v463 = vpop.permute.xlu0 %462
    %vm466 = vcmask 130112
    %467 = vst.msk [vmem:[#allocation2] sm:$0xff] %vm466, %v461
    %468 = vst.msk [vmem:[#allocation2 + $0x8] sm:$0xff] %vm466, %v463
    %469 = vrot.lane.b32.xlu0 %v209, 112
    %v470 = vpop.permute.xlu0 %469
    %471 = vrot.lane.b32.xlu0 %v209, 80
    %v472 = vpop.permute.xlu0 %471
    %v474 = vsel %vm213, %v470, 0
    %v477 = vsel %vm213, %v472, 0
    %479 = vmatprep.subr.bf16.mxu0 0
    %480 = vmatpush1.bf16.xpose.msra.mxu0 %v477
    %481 = vmatprep.subr.bf16.mxu0 0
    %482 = vmatpush1.bf16.xpose.msra.mxu0 0
    %483 = vmatprep.subr.bf16.mxu0 0
    %484 = vmatpush1.bf16.xpose.msra.mxu0 0
    %485 = vmatprep.subr.bf16.mxu0 0
    %486 = vmatpush1.bf16.xpose.msra.mxu0 0
    %487 = vmatprep.subr.bf16.mxu0 0
    %488 = vmatpush1.bf16.xpose.msra.mxu0 0
    %489 = vmatprep.subr.bf16.mxu0 0
    %490 = vmatpush1.bf16.xpose.msra.mxu0 0
    %491 = vmatprep.subr.bf16.mxu0 0
    %492 = vmatpush1.bf16.xpose.msra.mxu0 0
    %493 = vmatprep.subr.bf16.mxu0 0
    %494 = vmatpush1.bf16.xpose.msra.mxu0 0
    %495 = vmatprep.subr.bf16.mxu0 0
    %496 = vmatpush1.bf16.xpose.msra.mxu0 0
    %497 = vmatprep.subr.bf16.mxu0 0
    %498 = vmatpush1.bf16.xpose.msra.mxu0 0
    %499 = vmatprep.subr.bf16.mxu0 0
    %500 = vmatpush1.bf16.xpose.msra.mxu0 0
    %501 = vmatprep.subr.bf16.mxu0 0
    %502 = vmatpush1.bf16.xpose.msra.mxu0 0
    %503 = vmatprep.subr.bf16.mxu0 0
    %504 = vmatpush1.bf16.xpose.msra.mxu0 0
    %505 = vmatprep.subr.bf16.mxu0 0
    %506 = vmatpush1.bf16.xpose.msra.mxu0 0
    %507 = vmatprep.subr.bf16.mxu0 0
    %508 = vmatpush1.bf16.xpose.msra.mxu0 0
    %509 = vmatprep.subr.bf16.mxu0 0
    %510 = vmatpush1.bf16.xpose.msra.mxu0 0
    %511 = vmatprep.mubr.bf16.mxu0 0
    %512 = vmatmul.mubr.bf16.gmra.mrb[0].mxu0 %v474
    %v513 = vpop.f32.mrb[0].mxu0
    %v514 = vadd.f32 0.0, %v513
    %v515 = vpop.f32.mrb[0].mxu0
    %v516 = vpop.f32.mrb[0].mxu0
    %v517 = vadd.f32 0.0, %v516
    %v518 = vpop.f32.mrb[0].mxu0
    %519 = vdwg.mxu0
    %v520 = vsel %vm85, %v514, -1e+09
    %v521 = vsel %vm86, %v517, -1e+09
    %v522 = vsel %vm100, %v520, -inf
    %523 = vmax.xlane.f32.xlu0 %v522
    %v524 = vpop.xlane.xlu0 %523
    %v525 = vsel %vm100, %v521, -inf
    %526 = vmax.xlane.f32.xlu0 %v525
    %v527 = vpop.xlane.xlu0 %526
    %v528 = vsub.f32 %v520, %v524
    %v529 = vsub.f32 %v521, %v527
    %v530 = vmul.f32 %v528, 1.442695
    %v531 = vpow.pop %v530
    %v532 = vmul.f32 %v529, 1.442695
    %v533 = vpow.pop %v532
    %v534 = vsel %vm100, %v531, 0.0
    %535 = vadd.xlane.f32.xlu0 %v534
    %v536 = vpop.xlane.xlu0 %535
    %v537 = vsel %vm100, %v533, 0.0
    %538 = vadd.xlane.f32.xlu0 %v537
    %v539 = vpop.xlane.xlu0 %538
    %v540 = vrcp.pop %v536
    %v541 = vrcp.pop %v539
    %v542 = vmul.f32 %v531, %v540
    %v543 = vmul.f32 %v533, %v541
    %v544 = vpack.c.bf16 %v543, %v542
    %545 = vrot.lane.b32.xlu0 %v209, 48
    %v546 = vpop.permute.xlu0 %545
    %v549 = vsel %vm100, %v544, 0
    %551 = vmatprep.subr.bf16.mxu0 0
    %552 = vmatpush1.bf16.msra.mxu0 %v546
    %553 = vmatprep.subr.bf16.mxu0 0
    %554 = vmatpush1.bf16.msra.mxu0 0
    %555 = vmatprep.subr.bf16.mxu0 0
    %556 = vmatpush1.bf16.msra.mxu0 0
    %557 = vmatprep.subr.bf16.mxu0 0
    %558 = vmatpush1.bf16.msra.mxu0 0
    %559 = vmatprep.subr.bf16.mxu0 0
    %560 = vmatpush1.bf16.msra.mxu0 0
    %561 = vmatprep.subr.bf16.mxu0 0
    %562 = vmatpush1.bf16.msra.mxu0 0
    %563 = vmatprep.subr.bf16.mxu0 0
    %564 = vmatpush1.bf16.msra.mxu0 0
    %565 = vmatprep.subr.bf16.mxu0 0
    %566 = vmatpush1.bf16.msra.mxu0 0
    %567 = vmatprep.subr.bf16.mxu0 0
    %568 = vmatpush1.bf16.msra.mxu0 0
    %569 = vmatprep.subr.bf16.mxu0 0
    %570 = vmatpush1.bf16.msra.mxu0 0
    %571 = vmatprep.subr.bf16.mxu0 0
    %572 = vmatpush1.bf16.msra.mxu0 0
    %573 = vmatprep.subr.bf16.mxu0 0
    %574 = vmatpush1.bf16.msra.mxu0 0
    %575 = vmatprep.subr.bf16.mxu0 0
    %576 = vmatpush1.bf16.msra.mxu0 0
    %577 = vmatprep.subr.bf16.mxu0 0
    %578 = vmatpush1.bf16.msra.mxu0 0
    %579 = vmatprep.subr.bf16.mxu0 0
    %580 = vmatpush1.bf16.msra.mxu0 0
    %581 = vmatprep.subr.bf16.mxu0 0
    %582 = vmatpush1.bf16.msra.mxu0 0
    %583 = vmatprep.mubr.bf16.mxu0 0
    %584 = vmatmul.mubr.bf16.gmra.mrb[0].mxu0 %v549
    %v585 = vpop.f32.mrb[0].mxu0
    %v586 = vadd.f32 0.0, %v585
    %v587 = vpop.f32.mrb[0].mxu0
    %v588 = vpop.f32.mrb[0].mxu0
    %v589 = vadd.f32 0.0, %v588
    %v590 = vpop.f32.mrb[0].mxu0
    %591 = vdwg.mxu0
    %594 = vrot.lane.b32.xlu0 %v586, 16
    %v595 = vpop.permute.xlu0 %594
    %596 = vrot.lane.b32.xlu0 %v589, 16
    %v597 = vpop.permute.xlu0 %596
    %vm600 = vcmask 195712
    %601 = vst.msk [vmem:[#allocation2] sm:$0xff] %vm600, %v595
    %602 = vst.msk [vmem:[#allocation2 + $0x8] sm:$0xff] %vm600, %v597
    %603 = vrot.lane.b32.xlu0 %v209, 104
    %v604 = vpop.permute.xlu0 %603
    %605 = vrot.lane.b32.xlu0 %v209, 72
    %v606 = vpop.permute.xlu0 %605
    %v608 = vsel %vm213, %v604, 0
    %v611 = vsel %vm213, %v606, 0
    %613 = vmatprep.subr.bf16.mxu0 0
    %614 = vmatpush1.bf16.xpose.msra.mxu0 %v611
    %615 = vmatprep.subr.bf16.mxu0 0
    %616 = vmatpush1.bf16.xpose.msra.mxu0 0
    %617 = vmatprep.subr.bf16.mxu0 0
    %618 = vmatpush1.bf16.xpose.msra.mxu0 0
    %619 = vmatprep.subr.bf16.mxu0 0
    %620 = vmatpush1.bf16.xpose.msra.mxu0 0
    %621 = vmatprep.subr.bf16.mxu0 0
    %622 = vmatpush1.bf16.xpose.msra.mxu0 0
    %623 = vmatprep.subr.bf16.mxu0 0
    %624 = vmatpush1.bf16.xpose.msra.mxu0 0
    %625 = vmatprep.subr.bf16.mxu0 0
    %626 = vmatpush1.bf16.xpose.msra.mxu0 0
    %627 = vmatprep.subr.bf16.mxu0 0
    %628 = vmatpush1.bf16.xpose.msra.mxu0 0
    %629 = vmatprep.subr.bf16.mxu0 0
    %630 = vmatpush1.bf16.xpose.msra.mxu0 0
    %631 = vmatprep.subr.bf16.mxu0 0
    %632 = vmatpush1.bf16.xpose.msra.mxu0 0
    %633 = vmatprep.subr.bf16.mxu0 0
    %634 = vmatpush1.bf16.xpose.msra.mxu0 0
    %635 = vmatprep.subr.bf16.mxu0 0
    %636 = vmatpush1.bf16.xpose.msra.mxu0 0
    %637 = vmatprep.subr.bf16.mxu0 0
    %638 = vmatpush1.bf16.xpose.msra.mxu0 0
    %639 = vmatprep.subr.bf16.mxu0 0
    %640 = vmatpush1.bf16.xpose.msra.mxu0 0
    %641 = vmatprep.subr.bf16.mxu0 0
    %642 = vmatpush1.bf16.xpose.msra.mxu0 0
    %643 = vmatprep.subr.bf16.mxu0 0
    %644 = vmatpush1.bf16.xpose.msra.mxu0 0
    %645 = vmatprep.mubr.bf16.mxu0 0
    %646 = vmatmul.mubr.bf16.gmra.mrb[0].mxu0 %v608
    %v647 = vpop.f32.mrb[0].mxu0
    %v648 = vadd.f32 0.0, %v647
    %v649 = vpop.f32.mrb[0].mxu0
    %v650 = vpop.f32.mrb[0].mxu0
    %v651 = vadd.f32 0.0, %v650
    %v652 = vpop.f32.mrb[0].mxu0
    %653 = vdwg.mxu0
    %v654 = vsel %vm85, %v648, -1e+09
    %v655 = vsel %vm86, %v651, -1e+09
    %v656 = vsel %vm100, %v654, -inf
    %657 = vmax.xlane.f32.xlu0 %v656
    %v658 = vpop.xlane.xlu0 %657
    %v659 = vsel %vm100, %v655, -inf
    %660 = vmax.xlane.f32.xlu0 %v659
    %v661 = vpop.xlane.xlu0 %660
    %v662 = vsub.f32 %v654, %v658
    %v663 = vsub.f32 %v655, %v661
    %v664 = vmul.f32 %v662, 1.442695
    %v665 = vpow.pop %v664
    %v666 = vmul.f32 %v663, 1.442695
    %v667 = vpow.pop %v666
    %v668 = vsel %vm100, %v665, 0.0
    %669 = vadd.xlane.f32.xlu0 %v668
    %v670 = vpop.xlane.xlu0 %669
    %v671 = vsel %vm100, %v667, 0.0
    %672 = vadd.xlane.f32.xlu0 %v671
    %v673 = vpop.xlane.xlu0 %672
    %v674 = vrcp.pop %v670
    %v675 = vrcp.pop %v673
    %v676 = vmul.f32 %v665, %v674
    %v677 = vmul.f32 %v667, %v675
    %v678 = vpack.c.bf16 %v677, %v676
    %679 = vrot.lane.b32.xlu0 %v209, 40
    %v680 = vpop.permute.xlu0 %679
    %v683 = vsel %vm100, %v678, 0
    %685 = vmatprep.subr.bf16.mxu0 0
    %686 = vmatpush1.bf16.msra.mxu0 %v680
    %687 = vmatprep.subr.bf16.mxu0 0
    %688 = vmatpush1.bf16.msra.mxu0 0
    %689 = vmatprep.subr.bf16.mxu0 0
    %690 = vmatpush1.bf16.msra.mxu0 0
    %691 = vmatprep.subr.bf16.mxu0 0
    %692 = vmatpush1.bf16.msra.mxu0 0
    %693 = vmatprep.subr.bf16.mxu0 0
    %694 = vmatpush1.bf16.msra.mxu0 0
    %695 = vmatprep.subr.bf16.mxu0 0
    %696 = vmatpush1.bf16.msra.mxu0 0
    %697 = vmatprep.subr.bf16.mxu0 0
    %698 = vmatpush1.bf16.msra.mxu0 0
    %699 = vmatprep.subr.bf16.mxu0 0
    %700 = vmatpush1.bf16.msra.mxu0 0
    %701 = vmatprep.subr.bf16.mxu0 0
    %702 = vmatpush1.bf16.msra.mxu0 0
    %703 = vmatprep.subr.bf16.mxu0 0
    %704 = vmatpush1.bf16.msra.mxu0 0
    %705 = vmatprep.subr.bf16.mxu0 0
    %706 = vmatpush1.bf16.msra.mxu0 0
    %707 = vmatprep.subr.bf16.mxu0 0
    %708 = vmatpush1.bf16.msra.mxu0 0
    %709 = vmatprep.subr.bf16.mxu0 0
    %710 = vmatpush1.bf16.msra.mxu0 0
    %711 = vmatprep.subr.bf16.mxu0 0
    %712 = vmatpush1.bf16.msra.mxu0 0
    %713 = vmatprep.subr.bf16.mxu0 0
    %714 = vmatpush1.bf16.msra.mxu0 0
    %715 = vmatprep.subr.bf16.mxu0 0
    %716 = vmatpush1.bf16.msra.mxu0 0
    %717 = vmatprep.mubr.bf16.mxu0 0
    %718 = vmatmul.mubr.bf16.gmra.mrb[0].mxu0 %v683
    %v719 = vpop.f32.mrb[0].mxu0
    %v720 = vadd.f32 0.0, %v719
    %v721 = vpop.f32.mrb[0].mxu0
    %v722 = vpop.f32.mrb[0].mxu0
    %v723 = vadd.f32 0.0, %v722
    %v724 = vpop.f32.mrb[0].mxu0
    %725 = vdwg.mxu0
    %728 = vrot.lane.b32.xlu0 %v720, 24
    %v729 = vpop.permute.xlu0 %728
    %730 = vrot.lane.b32.xlu0 %v723, 24
    %v731 = vpop.permute.xlu0 %730
    %vm734 = vcmask 261312
    %735 = vst.msk [vmem:[#allocation2] sm:$0xff] %vm734, %v729
    %736 = vst.msk [vmem:[#allocation2 + $0x8] sm:$0xff] %vm734, %v731
    %v737 = vld [vmem:[#allocation2] sm:$0xff]
    %v738 = vld [vmem:[#allocation2 + $0x8] sm:$0xff]
    %v739 = vpack.c.bf16 %v738, %v737
    %v740 = vlaneseq
    %v741 = vshrl.u32 %v740, 7
    %v742 = vsub.s32 0, %v741
    %v743 = vrot.slane %v75, %v742
    %v748 = vunpack.c.l.b16 %v53
    %v749 = vunpack.c.l.b16 %v54
    %v750 = vunpack.c.l.b16 %v55
    %v751 = vunpack.c.l.b16 %v56
    %v752 = vpack.c.b16 %v749, %v748
    %v753 = vpack.c.b16 %v751, %v750
    %v757 = vsel %vm164, %v739, 0
    %759 = vmatprep.subr.bf16.mxu0 0
    %760 = vmatpush1.bf16.msra.mxu0 %v752
    %761 = vmatprep.subr.bf16.mxu0 0
    %762 = vmatpush1.bf16.msra.mxu0 %v753
    %763 = vmatprep.subr.bf16.mxu0 0
    %764 = vmatpush1.bf16.msra.mxu0 0
    %765 = vmatprep.subr.bf16.mxu0 0
    %766 = vmatpush1.bf16.msra.mxu0 0
    %767 = vmatprep.subr.bf16.mxu0 0
    %768 = vmatpush1.bf16.msra.mxu0 0
    %769 = vmatprep.subr.bf16.mxu0 0
    %770 = vmatpush1.bf16.msra.mxu0 0
    %771 = vmatprep.subr.bf16.mxu0 0
    %772 = vmatpush1.bf16.msra.mxu0 0
    %773 = vmatprep.subr.bf16.mxu0 0
    %774 = vmatpush1.bf16.msra.mxu0 0
    %775 = vmatprep.subr.bf16.mxu0 0
    %776 = vmatpush1.bf16.msra.mxu0 0
    %777 = vmatprep.subr.bf16.mxu0 0
    %778 = vmatpush1.bf16.msra.mxu0 0
    %779 = vmatprep.subr.bf16.mxu0 0
    %780 = vmatpush1.bf16.msra.mxu0 0
    %781 = vmatprep.subr.bf16.mxu0 0
    %782 = vmatpush1.bf16.msra.mxu0 0
    %783 = vmatprep.subr.bf16.mxu0 0
    %784 = vmatpush1.bf16.msra.mxu0 0
    %785 = vmatprep.subr.bf16.mxu0 0
    %786 = vmatpush1.bf16.msra.mxu0 0
    %787 = vmatprep.subr.bf16.mxu0 0
    %788 = vmatpush1.bf16.msra.mxu0 0
    %789 = vmatprep.subr.bf16.mxu0 0
    %790 = vmatpush1.bf16.msra.mxu0 0
    %791 = vmatprep.mubr.bf16.mxu0 0
    %792 = vmatmul.mubr.bf16.gmra.mrb[0].mxu0 %v757
    %v793 = vpop.f32.mrb[0].mxu0
    %v794 = vadd.f32 %v743, %v793
    %v795 = vpop.f32.mrb[0].mxu0
    %v796 = vpop.f32.mrb[0].mxu0
    %v797 = vadd.f32 %v743, %v796
    %v798 = vpop.f32.mrb[0].mxu0
    %799 = vdwg.mxu0
    %v800 = vpack.c.bf16 %v797, %v794
    %v801 = vlaneseq
    %v802 = vshrl.u32 %v801, 7
    %v803 = vsub.s32 0, %v802
    %v804 = vrot.slane %v76, %v803
    %v809 = vunpack.c.l.b16 %v57
    %v810 = vunpack.c.l.b16 %v58
    %v811 = vunpack.c.l.b16 %v59
    %v812 = vunpack.c.l.b16 %v60
    %v813 = vpack.c.b16 %v810, %v809
    %v814 = vpack.c.b16 %v812, %v811
    %v818 = vsel %vm164, %v800, 0
    %820 = vmatprep.subr.bf16.mxu0 0
    %821 = vmatpush1.bf16.msra.mxu0 %v813
    %822 = vmatprep.subr.bf16.mxu0 0
    %823 = vmatpush1.bf16.msra.mxu0 %v814
    %824 = vmatprep.subr.bf16.mxu0 0
    %825 = vmatpush1.bf16.msra.mxu0 0
    %826 = vmatprep.subr.bf16.mxu0 0
    %827 = vmatpush1.bf16.msra.mxu0 0
    %828 = vmatprep.subr.bf16.mxu0 0
    %829 = vmatpush1.bf16.msra.mxu0 0
    %830 = vmatprep.subr.bf16.mxu0 0
    %831 = vmatpush1.bf16.msra.mxu0 0
    %832 = vmatprep.subr.bf16.mxu0 0
    %833 = vmatpush1.bf16.msra.mxu0 0
    %834 = vmatprep.subr.bf16.mxu0 0
    %835 = vmatpush1.bf16.msra.mxu0 0
    %836 = vmatprep.subr.bf16.mxu0 0
    %837 = vmatpush1.bf16.msra.mxu0 0
    %838 = vmatprep.subr.bf16.mxu0 0
    %839 = vmatpush1.bf16.msra.mxu0 0
    %840 = vmatprep.subr.bf16.mxu0 0
    %841 = vmatpush1.bf16.msra.mxu0 0
    %842 = vmatprep.subr.bf16.mxu0 0
    %843 = vmatpush1.bf16.msra.mxu0 0
    %844 = vmatprep.subr.bf16.mxu0 0
    %845 = vmatpush1.bf16.msra.mxu0 0
    %846 = vmatprep.subr.bf16.mxu0 0
    %847 = vmatpush1.bf16.msra.mxu0 0
    %848 = vmatprep.subr.bf16.mxu0 0
    %849 = vmatpush1.bf16.msra.mxu0 0
    %850 = vmatprep.subr.bf16.mxu0 0
    %851 = vmatpush1.bf16.msra.mxu0 0
    %852 = vmatprep.mubr.bf16.mxu0 0
    %853 = vmatmul.mubr.bf16.gmra.mrb[0].mxu0 %v818
    %v854 = vpop.f32.mrb[0].mxu0
    %v855 = vadd.f32 %v804, %v854
    %v856 = vpop.f32.mrb[0].mxu0
    %v857 = vpop.f32.mrb[0].mxu0
    %v858 = vadd.f32 %v804, %v857
    %v859 = vpop.f32.mrb[0].mxu0
    %860 = vdwg.mxu0
    %v861 = vmax.f32 %v855, 0.0
    %v862 = vmax.f32 %v858, 0.0
    %v863 = vlaneseq
    %v864 = vshrl.u32 %v863, 7
    %v865 = vsub.s32 0, %v864
    %v866 = vrot.slane %v77, %v865
    %v871 = vunpack.c.l.b16 %v61
    %v872 = vunpack.c.l.b16 %v62
    %v873 = vunpack.c.l.b16 %v63
    %v874 = vunpack.c.l.b16 %v64
    %v875 = vpack.c.b16 %v872, %v871
    %v876 = vpack.c.b16 %v874, %v873
    %879 = vmatprep.subr.bf16.mxu0 0
    %880 = vmatpush1.bf16.msra.mxu0 %v875
    %881 = vmatprep.subr.bf16.mxu0 0
    %882 = vmatpush1.bf16.msra.mxu0 %v876
    %883 = vmatprep.subr.bf16.mxu0 0
    %884 = vmatpush1.bf16.msra.mxu0 0
    %885 = vmatprep.subr.bf16.mxu0 0
    %886 = vmatpush1.bf16.msra.mxu0 0
    %887 = vmatprep.subr.bf16.mxu0 0
    %888 = vmatpush1.bf16.msra.mxu0 0
    %889 = vmatprep.subr.bf16.mxu0 0
    %890 = vmatpush1.bf16.msra.mxu0 0
    %891 = vmatprep.subr.bf16.mxu0 0
    %892 = vmatpush1.bf16.msra.mxu0 0
    %893 = vmatprep.subr.bf16.mxu0 0
    %894 = vmatpush1.bf16.msra.mxu0 0
    %895 = vmatprep.subr.bf16.mxu0 0
    %896 = vmatpush1.bf16.msra.mxu0 0
    %897 = vmatprep.subr.bf16.mxu0 0
    %898 = vmatpush1.bf16.msra.mxu0 0
    %899 = vmatprep.subr.bf16.mxu0 0
    %900 = vmatpush1.bf16.msra.mxu0 0
    %901 = vmatprep.subr.bf16.mxu0 0
    %902 = vmatpush1.bf16.msra.mxu0 0
    %903 = vmatprep.subr.bf16.mxu0 0
    %904 = vmatpush1.bf16.msra.mxu0 0
    %905 = vmatprep.subr.bf16.mxu0 0
    %906 = vmatpush1.bf16.msra.mxu0 0
    %907 = vmatprep.subr.bf16.mxu0 0
    %908 = vmatpush1.bf16.msra.mxu0 0
    %909 = vmatprep.subr.bf16.mxu0 0
    %910 = vmatpush1.bf16.msra.mxu0 0
    %911 = vmatprep.mubr.bf16.mxu0 0
    %912 = vmatmul.mubr.bf16.gmra.mrb[0].mxu0 %v166
    %v913 = vpop.f32.mrb[0].mxu0
    %v914 = vadd.f32 %v866, %v913
    %v915 = vpop.f32.mrb[0].mxu0
    %v916 = vpop.f32.mrb[0].mxu0
    %v917 = vadd.f32 %v866, %v916
    %v918 = vpop.f32.mrb[0].mxu0
    %919 = vdwg.mxu0
    %v920 = vmax.f32 %v914, 0.0
    %v921 = vmax.f32 %v917, 0.0
    %v922 = vpack.c.bf16 %v921, %v920
    %v923 = vlaneseq
    %v924 = vshrl.u32 %v923, 7
    %v925 = vsub.s32 0, %v924
    %v926 = vrot.slane %v78, %v925
    %v931 = vunpack.c.l.b16 %v43
    %v932 = vunpack.c.l.b16 %v44
    %v933 = vunpack.c.l.b16 %v45
    %v934 = vunpack.c.l.b16 %v46
    %v935 = vpack.c.b16 %v932, %v931
    %v936 = vpack.c.b16 %v934, %v933
    %v940 = vsel %vm164, %v922, 0
    %942 = vmatprep.subr.bf16.mxu0 0
    %943 = vmatpush1.bf16.msra.mxu0 %v935
    %944 = vmatprep.subr.bf16.mxu0 0
    %945 = vmatpush1.bf16.msra.mxu0 %v936
    %946 = vmatprep.subr.bf16.mxu0 0
    %947 = vmatpush1.bf16.msra.mxu0 0
    %948 = vmatprep.subr.bf16.mxu0 0
    %949 = vmatpush1.bf16.msra.mxu0 0
    %950 = vmatprep.subr.bf16.mxu0 0
    %951 = vmatpush1.bf16.msra.mxu0 0
    %952 = vmatprep.subr.bf16.mxu0 0
    %953 = vmatpush1.bf16.msra.mxu0 0
    %954 = vmatprep.subr.bf16.mxu0 0
    %955 = vmatpush1.bf16.msra.mxu0 0
    %956 = vmatprep.subr.bf16.mxu0 0
    %957 = vmatpush1.bf16.msra.mxu0 0
    %958 = vmatprep.subr.bf16.mxu0 0
    %959 = vmatpush1.bf16.msra.mxu0 0
    %960 = vmatprep.subr.bf16.mxu0 0
    %961 = vmatpush1.bf16.msra.mxu0 0
    %962 = vmatprep.subr.bf16.mxu0 0
    %963 = vmatpush1.bf16.msra.mxu0 0
    %964 = vmatprep.subr.bf16.mxu0 0
    %965 = vmatpush1.bf16.msra.mxu0 0
    %966 = vmatprep.subr.bf16.mxu0 0
    %967 = vmatpush1.bf16.msra.mxu0 0
    %968 = vmatprep.subr.bf16.mxu0 0
    %969 = vmatpush1.bf16.msra.mxu0 0
    %970 = vmatprep.subr.bf16.mxu0 0
    %971 = vmatpush1.bf16.msra.mxu0 0
    %972 = vmatprep.subr.bf16.mxu0 0
    %973 = vmatpush1.bf16.msra.mxu0 0
    %974 = vmatprep.mubr.bf16.mxu0 0
    %975 = vmatmul.mubr.bf16.gmra.mrb[0].mxu0 %v940
    %v976 = vpop.f32.mrb[0].mxu0
    %v977 = vadd.f32 %v926, %v976
    %v978 = vpop.f32.mrb[0].mxu0
    %v979 = vpop.f32.mrb[0].mxu0
    %v980 = vadd.f32 %v926, %v979
    %v981 = vpop.f32.mrb[0].mxu0
    %982 = vdwg.mxu0
    %v983 = vpack.c.bf16 %v88, %v87
    %v984 = vlaneseq
    %v985 = vshrl.u32 %v984, 7
    %v986 = vsub.s32 0, %v985
    %v987 = vrot.slane %v79, %v986
    %v992 = vunpack.c.l.b16 %v47
    %v993 = vunpack.c.l.b16 %v48
    %v994 = vunpack.c.l.b16 %v49
    %v995 = vunpack.c.l.b16 %v50
    %v996 = vpack.c.b16 %v993, %v992
    %v997 = vpack.c.b16 %v995, %v994
    %v1001 = vsel %vm164, %v983, 0
    %1003 = vmatprep.subr.bf16.mxu0 0
    %1004 = vmatpush1.bf16.msra.mxu0 %v996
    %1005 = vmatprep.subr.bf16.mxu0 0
    %1006 = vmatpush1.bf16.msra.mxu0 %v997
    %1007 = vmatprep.subr.bf16.mxu0 0
    %1008 = vmatpush1.bf16.msra.mxu0 0
    %1009 = vmatprep.subr.bf16.mxu0 0
    %1010 = vmatpush1.bf16.msra.mxu0 0
    %1011 = vmatprep.subr.bf16.mxu0 0
    %1012 = vmatpush1.bf16.msra.mxu0 0
    %1013 = vmatprep.subr.bf16.mxu0 0
    %1014 = vmatpush1.bf16.msra.mxu0 0
    %1015 = vmatprep.subr.bf16.mxu0 0
    %1016 = vmatpush1.bf16.msra.mxu0 0
    %1017 = vmatprep.subr.bf16.mxu0 0
    %1018 = vmatpush1.bf16.msra.mxu0 0
    %1019 = vmatprep.subr.bf16.mxu0 0
    %1020 = vmatpush1.bf16.msra.mxu0 0
    %1021 = vmatprep.subr.bf16.mxu0 0
    %1022 = vmatpush1.bf16.msra.mxu0 0
    %1023 = vmatprep.subr.bf16.mxu0 0
    %1024 = vmatpush1.bf16.msra.mxu0 0
    %1025 = vmatprep.subr.bf16.mxu0 0
    %1026 = vmatpush1.bf16.msra.mxu0 0
    %1027 = vmatprep.subr.bf16.mxu0 0
    %1028 = vmatpush1.bf16.msra.mxu0 0
    %1029 = vmatprep.subr.bf16.mxu0 0
    %1030 = vmatpush1.bf16.msra.mxu0 0
    %1031 = vmatprep.subr.bf16.mxu0 0
    %1032 = vmatpush1.bf16.msra.mxu0 0
    %1033 = vmatprep.subr.bf16.mxu0 0
    %1034 = vmatpush1.bf16.msra.mxu0 0
    %1035 = vmatprep.mubr.bf16.mxu0 0
    %1036 = vmatmul.mubr.bf16.gmra.mrb[0].mxu0 %v1001
    %v1037 = vpop.f32.mrb[0].mxu0
    %v1038 = vadd.f32 %v987, %v1037
    %v1039 = vpop.f32.mrb[0].mxu0
    %v1040 = vpop.f32.mrb[0].mxu0
    %v1041 = vadd.f32 %v987, %v1040
    %v1042 = vpop.f32.mrb[0].mxu0
    %1043 = vdwg.mxu0
    %v1044 = vadd.f32 %v977, %v1038
    %v1045 = vadd.f32 %v980, %v1041
    %v1046 = vxor.u32 %v1044, 2147483648
    %v1047 = vxor.u32 %v1045, 2147483648
    %v1048 = vmul.f32 %v1046, 1.442695
    %v1049 = vpow.pop %v1048
    %v1050 = vmul.f32 %v1047, 1.442695
    %v1051 = vpow.pop %v1050
    %v1052 = vadd.f32 %v1049, 1.0
    %v1053 = vadd.f32 %v1051, 1.0
    %v1054 = vrcp.pop %v1052
    %v1055 = vmul.f32 1.0, %v1054
    %v1056 = vrcp.pop %v1053
    %v1057 = vmul.f32 1.0, %v1056
    %1060 = vrot.lane.b32.xlu0 %v1038, 64
    %v1061 = vpop.permute.xlu0 %1060
    %1062 = vrot.lane.b32.xlu0 %v1041, 64
    %v1063 = vpop.permute.xlu0 %1062
    %v1066 = vmul.f32 %v1055, %v1061
    %v1067 = vmul.f32 %v1057, %v1063
    %1070 = vrot.lane.b32.xlu0 %v1066, 64
    %v1071 = vpop.permute.xlu0 %1070
    %1072 = vrot.lane.b32.xlu0 %v1067, 64
    %v1073 = vpop.permute.xlu0 %1072
    %v1076 = vadd.f32 %v977, %v1071
    %v1077 = vadd.f32 %v980, %v1073
    %v1078 = vtanh.pop %v1076
    %v1079 = vtanh.pop %v1077
    %v1080 = vsub.f32 1.0, %v1055
    %v1081 = vsub.f32 1.0, %v1057
    %1084 = vrot.lane.b32.xlu0 %v1078, 96
    %v1085 = vpop.permute.xlu0 %1084
    %1086 = vrot.lane.b32.xlu0 %v1079, 96
    %v1087 = vpop.permute.xlu0 %1086
    %v1090 = vmul.f32 %v1080, %v1085
    %v1091 = vmul.f32 %v1081, %v1087
    %1094 = vrot.lane.b32.xlu0 %v87, 32
    %v1095 = vpop.permute.xlu0 %1094
    %1096 = vrot.lane.b32.xlu0 %v88, 32
    %v1097 = vpop.permute.xlu0 %1096
    %v1100 = vmul.f32 %v1055, %v1095
    %v1101 = vmul.f32 %v1057, %v1097
    %v1102 = vadd.f32 %v1090, %v1100
    %v1103 = vadd.f32 %v1091, %v1101
    %1106 = vrot.lane.b32.xlu0 %v1102, 96
    %v1107 = vpop.permute.xlu0 %1106
    %1108 = vrot.lane.b32.xlu0 %v1103, 96
    %v1109 = vpop.permute.xlu0 %1108
    %1112 = vst.msk [vmem:[#allocation7] sm:$0xff] %vm164, %v1107
    %1113 = vst.msk [vmem:[#allocation7 + $0x8] sm:$0xff] %vm164, %v1109
    %v1114 = vpack.c.bf16 %v862, %v861
    %v1115 = vpack.c.bf16 %v1103, %v1102
    %1117 = vrot.lane.b32.xlu0 %v1115, 96
    %v1118 = vpop.permute.xlu0 %1117
    %v1123 = vunpack.c.l.b16 %v69
    %v1124 = vunpack.c.l.b16 %v70
    %v1125 = vunpack.c.l.b16 %v71
    %v1126 = vunpack.c.l.b16 %v72
    %v1127 = vpack.c.b16 %v1124, %v1123
    %v1128 = vpack.c.b16 %v1126, %v1125
    %v1132 = vsel %vm164, %v1118, 0
    %1134 = vmatprep.subr.bf16.mxu0 0
    %1135 = vmatpush1.bf16.msra.mxu0 %v1127
    %1136 = vmatprep.subr.bf16.mxu0 0
    %1137 = vmatpush1.bf16.msra.mxu0 %v1128
    %1138 = vmatprep.subr.bf16.mxu0 0
    %1139 = vmatpush1.bf16.msra.mxu0 0
    %1140 = vmatprep.subr.bf16.mxu0 0
    %1141 = vmatpush1.bf16.msra.mxu0 0
    %1142 = vmatprep.subr.bf16.mxu0 0
    %1143 = vmatpush1.bf16.msra.mxu0 0
    %1144 = vmatprep.subr.bf16.mxu0 0
    %1145 = vmatpush1.bf16.msra.mxu0 0
    %1146 = vmatprep.subr.bf16.mxu0 0
    %1147 = vmatpush1.bf16.msra.mxu0 0
    %1148 = vmatprep.subr.bf16.mxu0 0
    %1149 = vmatpush1.bf16.msra.mxu0 0
    %1150 = vmatprep.subr.bf16.mxu0 0
    %1151 = vmatpush1.bf16.msra.mxu0 0
    %1152 = vmatprep.subr.bf16.mxu0 0
    %1153 = vmatpush1.bf16.msra.mxu0 0
    %1154 = vmatprep.subr.bf16.mxu0 0
    %1155 = vmatpush1.bf16.msra.mxu0 0
    %1156 = vmatprep.subr.bf16.mxu0 0
    %1157 = vmatpush1.bf16.msra.mxu0 0
    %1158 = vmatprep.subr.bf16.mxu0 0
    %1159 = vmatpush1.bf16.msra.mxu0 0
    %1160 = vmatprep.subr.bf16.mxu0 0
    %1161 = vmatpush1.bf16.msra.mxu0 0
    %1162 = vmatprep.subr.bf16.mxu0 0
    %1163 = vmatpush1.bf16.msra.mxu0 0
    %1164 = vmatprep.subr.bf16.mxu0 0
    %1165 = vmatpush1.bf16.msra.mxu0 0
    %1166 = vmatprep.mubr.bf16.mxu0 0
    %1167 = vmatmul.mubr.bf16.gmra.mrb[0].mxu0 %v1132
    %v1168 = vpop.f32.mrb[0].mxu0
    %v1169 = vadd.f32 0.0, %v1168
    %v1170 = vpop.f32.mrb[0].mxu0
    %v1171 = vpop.f32.mrb[0].mxu0
    %v1172 = vadd.f32 0.0, %v1171
    %v1173 = vpop.f32.mrb[0].mxu0
    %1174 = vdwg.mxu0
    %v1179 = vunpack.c.l.b16 %v65
    %v1180 = vunpack.c.l.b16 %v66
    %v1181 = vunpack.c.l.b16 %v67
    %v1182 = vunpack.c.l.b16 %v68
    %v1183 = vpack.c.b16 %v1180, %v1179
    %v1184 = vpack.c.b16 %v1182, %v1181
    %v1188 = vsel %vm164, %v1114, 0
    %1190 = vmatprep.subr.bf16.mxu0 0
    %1191 = vmatpush1.bf16.msra.mxu0 %v1183
    %1192 = vmatprep.subr.bf16.mxu0 0
    %1193 = vmatpush1.bf16.msra.mxu0 %v1184
    %1194 = vmatprep.subr.bf16.mxu0 0
    %1195 = vmatpush1.bf16.msra.mxu0 0
    %1196 = vmatprep.subr.bf16.mxu0 0
    %1197 = vmatpush1.bf16.msra.mxu0 0
    %1198 = vmatprep.subr.bf16.mxu0 0
    %1199 = vmatpush1.bf16.msra.mxu0 0
    %1200 = vmatprep.subr.bf16.mxu0 0
    %1201 = vmatpush1.bf16.msra.mxu0 0
    %1202 = vmatprep.subr.bf16.mxu0 0
    %1203 = vmatpush1.bf16.msra.mxu0 0
    %1204 = vmatprep.subr.bf16.mxu0 0
    %1205 = vmatpush1.bf16.msra.mxu0 0
    %1206 = vmatprep.subr.bf16.mxu0 0
    %1207 = vmatpush1.bf16.msra.mxu0 0
    %1208 = vmatprep.subr.bf16.mxu0 0
    %1209 = vmatpush1.bf16.msra.mxu0 0
    %1210 = vmatprep.subr.bf16.mxu0 0
    %1211 = vmatpush1.bf16.msra.mxu0 0
    %1212 = vmatprep.subr.bf16.mxu0 0
    %1213 = vmatpush1.bf16.msra.mxu0 0
    %1214 = vmatprep.subr.bf16.mxu0 0
    %1215 = vmatpush1.bf16.msra.mxu0 0
    %1216 = vmatprep.subr.bf16.mxu0 0
    %1217 = vmatpush1.bf16.msra.mxu0 0
    %1218 = vmatprep.subr.bf16.mxu0 0
    %1219 = vmatpush1.bf16.msra.mxu0 0
    %1220 = vmatprep.subr.bf16.mxu0 0
    %1221 = vmatpush1.bf16.msra.mxu0 0
    %1222 = vmatprep.mubr.bf16.mxu0 0
    %1223 = vmatmul.mubr.bf16.gmra.mrb[0].mxu0 %v1188
    %v1224 = vpop.f32.mrb[0].mxu0
    %v1225 = vadd.f32 %v1169, %v1224
    %v1226 = vpop.f32.mrb[0].mxu0
    %v1227 = vpop.f32.mrb[0].mxu0
    %v1228 = vadd.f32 %v1172, %v1227
    %v1229 = vpop.f32.mrb[0].mxu0
    %1230 = vdwg.mxu0
    %v1231 = vlaneseq
    %v1232 = vshrl.u32 %v1231, 7
    %v1233 = vsub.s32 0, %v1232
    %v1234 = vrot.slane %v80, %v1233
    %v1235 = vadd.f32 %v1225, %v1234
    %v1236 = vadd.f32 %v1228, %v1234
    %vm1237 = vcmask 48128
    %v1239 = vsel %vm1237, 0.16666667, 0
    %v1242 = vsel %vm1237, %v1235, 0
    %v1245 = vsel %vm1237, %v1236, 0
    %1247 = vmatprep.subr.mxu0 0.0
    %1248 = vmatpush1.xpose.msra.mxu0 %v1242
    %1249 = vmatprep.subr.mxu0 0.0
    %1250 = vmatpush1.xpose.msra.mxu0 %v1245
    %1251 = vmatprep.subr.mxu0 0.0
    %1252 = vmatpush1.xpose.msra.mxu0 0.0
    %1253 = vmatprep.subr.mxu0 0.0
    %1254 = vmatpush1.xpose.msra.mxu0 0.0
    %1255 = vmatprep.subr.mxu0 0.0
    %1256 = vmatpush1.xpose.msra.mxu0 0.0
    %1257 = vmatprep.subr.mxu0 0.0
    %1258 = vmatpush1.xpose.msra.mxu0 0.0
    %1259 = vmatprep.subr.mxu0 0.0
    %1260 = vmatpush1.xpose.msra.mxu0 0.0
    %1261 = vmatprep.subr.mxu0 0.0
    %1262 = vmatpush1.xpose.msra.mxu0 0.0
    %1263 = vmatprep.subr.mxu0 0.0
    %1264 = vmatpush1.xpose.msra.mxu0 0.0
    %1265 = vmatprep.subr.mxu0 0.0
    %1266 = vmatpush1.xpose.msra.mxu0 0.0
    %1267 = vmatprep.subr.mxu0 0.0
    %1268 = vmatpush1.xpose.msra.mxu0 0.0
    %1269 = vmatprep.subr.mxu0 0.0
    %1270 = vmatpush1.xpose.msra.mxu0 0.0
    %1271 = vmatprep.subr.mxu0 0.0
    %1272 = vmatpush1.xpose.msra.mxu0 0.0
    %1273 = vmatprep.subr.mxu0 0.0
    %1274 = vmatpush1.xpose.msra.mxu0 0.0
    %1275 = vmatprep.subr.mxu0 0.0
    %1276 = vmatpush1.xpose.msra.mxu0 0.0
    %1277 = vmatprep.subr.mxu0 0.0
    %1278 = vmatpush1.xpose.msra.mxu0 0.0
    %1279 = vmatprep.subr.mxu0 0.0
    %1280 = vmatpush1.xpose.msra.mxu0 0.0
    %1281 = vmatprep.subr.mxu0 0.0
    %1282 = vmatpush1.xpose.msra.mxu0 0.0
    %1283 = vmatprep.subr.mxu0 0.0
    %1284 = vmatpush1.xpose.msra.mxu0 0.0
    %1285 = vmatprep.subr.mxu0 0.0
    %1286 = vmatpush1.xpose.msra.mxu0 0.0
    %1287 = vmatprep.subr.mxu0 0.0
    %1288 = vmatpush1.xpose.msra.mxu0 0.0
    %1289 = vmatprep.subr.mxu0 0.0
    %1290 = vmatpush1.xpose.msra.mxu0 0.0
    %1291 = vmatprep.subr.mxu0 0.0
    %1292 = vmatpush1.xpose.msra.mxu0 0.0
    %1293 = vmatprep.subr.mxu0 0.0
    %1294 = vmatpush1.xpose.msra.mxu0 0.0
    %1295 = vmatprep.subr.mxu0 0.0
    %1296 = vmatpush1.xpose.msra.mxu0 0.0
    %1297 = vmatprep.subr.mxu0 0.0
    %1298 = vmatpush1.xpose.msra.mxu0 0.0
    %1299 = vmatprep.subr.mxu0 0.0
    %1300 = vmatpush1.xpose.msra.mxu0 0.0
    %1301 = vmatprep.subr.mxu0 0.0
    %1302 = vmatpush1.xpose.msra.mxu0 0.0
    %1303 = vmatprep.subr.mxu0 0.0
    %1304 = vmatpush1.xpose.msra.mxu0 0.0
    %1305 = vmatprep.subr.mxu0 0.0
    %1306 = vmatpush1.xpose.msra.mxu0 0.0
    %1307 = vmatprep.subr.mxu0 0.0
    %1308 = vmatpush1.xpose.msra.mxu0 0.0
    %1309 = vmatprep.subr.mxu0 0.0
    %1310 = vmatpush1.xpose.msra.mxu0 0.0
    %1311 = vmatprep.mubr.f32.mxu0 0.0
    %1312 = vmatmul.mubr.f32.gmra.mrb[0].mxu0 %v1239
    %v1313 = vpop.f32.mrb[0].mxu0
    %v1314 = vadd.f32 0.0, %v1313
    %v1315 = vpop.f32.mrb[0].mxu0
    %1316 = vdwg.mxu0
    %vm1317 = vcmask 40960
    %1318 = vst.msk [vmem:[#allocation6] sm:$0x1] %vm1317, %v1235
    %1320 = vrot.lane.b32.xlu0 %v1314, 5
    %v1321 = vpop.permute.xlu0 %1320
    %vm1323 = vcmask 65584
    %1324 = vst.msk [vmem:[#allocation6] sm:$0x1] %vm1323, %v1321
    %vm1325 = vcmask 98376
    %1326 = vst.msk [vmem:[#allocation6] sm:$0x1] %vm1325, %v1321
    %1327 = vst.msk [vmem:[#allocation6 + $0x1] sm:$0x1] %vm1317, %v1236
    %1328 = vrot.lane.b32.xlu0 %v1314, 125
    %v1329 = vpop.permute.xlu0 %1328
    %1331 = vst.msk [vmem:[#allocation6 + $0x1] sm:$0x1] %vm1323, %v1329
    %1332 = vst.msk [vmem:[#allocation6 + $0x1] sm:$0x1] %vm1325, %v1329
    // Predicated region
    $region26: #{token_wise_branch_attn_forward.1} parent=1 // pred_check
      _
    $region27: #{token_wise_branch_attn_forward.1} parent=1 // pred_check_branch
      %1334 = sbr.rel (0) target = $region29
    $region28: #{token_wise_branch_attn_forward.1} parent=1 // pred_region
      %s1336 = ssub.s32 32, 32
      %1337 = vsyncadd [#allocation5], %s1336
      %s1339 = sshll.u32 [#allocation6], 4
      %s1340 = int_to_ptr.vmem [resolvable:$true] %s1339
      %1342 = dma.vmem_to_hbm [thread:$0]  %s1340, 32, %s5, [#allocation5]
    $region29: #{token_wise_branch_attn_forward.1} parent=1 // pred_fallthru
      _
    // Predicated region
    $region30: #{token_wise_branch_attn_forward.1} parent=1 // pred_check
      _
    $region31: #{token_wise_branch_attn_forward.1} parent=1 // pred_check_branch
      %1344 = sbr.rel (0) target = $region33
    $region32: #{token_wise_branch_attn_forward.1} parent=1 // pred_region
      %s1346 = ssub.s32 256, 256
      %1347 = vsyncadd [#allocation8], %s1346
      %s1348 = sshll.u32 [#allocation7], 4
      %s1349 = int_to_ptr.vmem [resolvable:$true] %s1348
      %1354 = dma.vmem_to_hbm [thread:$0]  %s1349, 256, %s6, [#allocation8], 128, 128, 8
    $region33: #{token_wise_branch_attn_forward.1} parent=1 // pred_fallthru
      _
    // Predicated region
    $region34: #{token_wise_branch_attn_forward.1} parent=1 // pred_check
      _
    $region35: #{token_wise_branch_attn_forward.1} parent=1 // pred_check_branch
      %1356 = sbr.rel (0) target = $region37
    $region36: #{token_wise_branch_attn_forward.1} parent=1 // pred_region
      %1357 = dma.done [#allocation5], 32
    $region37: #{token_wise_branch_attn_forward.1} parent=1 // pred_fallthru
      _
    // Predicated region
    $region38: #{token_wise_branch_attn_forward.1} parent=1 // pred_check
      _
    $region39: #{token_wise_branch_attn_forward.1} parent=1 // pred_check_branch
      %1359 = sbr.rel (0) target = $region41
    $region40: #{token_wise_branch_attn_forward.1} parent=1 // pred_region
      %1360 = dma.done [#allocation8], 256
    $region41: #{token_wise_branch_attn_forward.1} parent=1 // pred_fallthru
      _
    %1361 = vsyncpa [#allocation4], 1
    %1362 = vsyncpa [#allocation5], 1
    %1363 = vsyncpa [#allocation8], 1

</llo_original>
